<compile_context>
chip_gen: v7x
topology: tpu7x:2x2x1
jax: 0.10.0
libtpu: 0.0.40
codegen_flags: <defaults>
</compile_context>

<pallas_src>
import functools

import jax
import jax.numpy as jnp
from jax.experimental import pallas as pl
from jax.experimental.pallas import tpu as pltpu


# ----------------------------------------------------------------------------
# Kernel
# ----------------------------------------------------------------------------
def _vgg_block_kernel(*refs, n_layers, h, w, cins, cout, final_stride,
                      band_rows, negative_slope):
    """One image per grid step.  Activations are kept in VMEM channel-major,
    zero-padded and row-flattened:  act[c, r*Wp + col],  Wp = W + 2."""
    wp = w + 2                      # padded row length (flattened lane axis)
    p = (h + 2) * wp                # padded image length

    # ---- unpack refs (layout decided by the wrapper) ------------------------
    i = 0
    x_ref = refs[i]; i += 1                        # (1, Cin0, P) bf16, pre-padded
    w_refs = refs[i:i + n_layers]; i += n_layers   # (Cout, 9*Cin) bf16 each
    mask_ref = None
    if n_layers >= 2:
        mask_ref = refs[i]; i += 1                 # (1, H*Wp) bf16 junk-col mask
    sel_ref = None
    if final_stride > 1:
        sel_ref = refs[i]; i += 1                  # (W, Wo) f32 column selector
    o_ref = refs[i]; i += 1                        # (1, Cout, Ho*Wo)
    mids = refs[i:]                                # 0..2 x (Cout, P) bf16 scratch

    # Zero the top halo row and the trailing halo of each intermediate scratch
    # once per step; the side halo columns inside the interior are written by
    # the masked re-stage stores below.  (Re-done every step, so the grid axis
    # stays safely "parallel".)
    bot = h * wp + w + 1
    for mid in mids:
        mid[:, 0:wp + 1] = jnp.zeros((cout, wp + 1), mid.dtype)
        mid[:, bot:p] = jnp.zeros((cout, p - bot), mid.dtype)

    for li in range(n_layers):
        cin = cins[li]
        is_final = li == n_layers - 1
        s = final_stride if is_final else 1
        ho = (h - 1) // s + 1
        wo = (w - 1) // s + 1
        w_ref = w_refs[li]
        dst = None if is_final else mids[li % 2]

        r0 = 0
        while r0 < ho:                             # static row-band loop
            rows = min(band_rows, ho - r0)
            q0 = r0 * s * wp
            if is_final:
                l = (rows - 1) * s * wp + w
            elif r0 + rows < ho:
                l = rows * wp
            else:
                l = (rows - 1) * wp + w

            # im2col: the 9 taps are contiguous static lane slices of the
            # flattened, zero-padded source activation (bf16).
            taps = []
            for dh in range(3):
                for dw in range(3):
                    a = q0 + dh * wp + dw
                    if li == 0:
                        taps.append(x_ref[0, :, a:a + l])
                    else:
                        taps.append(mids[(li - 1) % 2][:, a:a + l])
            patches = jnp.concatenate(taps, axis=0)             # (9*Cin, l) bf16

            # Single MXU pass, f32 accumulation, fused LeakyReLU.
            acc = jnp.dot(w_ref[...], patches,
                          preferred_element_type=jnp.float32)   # (Cout, l) f32
            act = jnp.where(acc > 0, acc, negative_slope * acc)

            if not is_final:
                # On-chip re-stage: a constant lane shift of Wp+1 maps output
                # pixel (y, x) onto padded position (y+1, x+1); the 2 junk
                # columns per row (masked to 0) land exactly on the next
                # layer's zero halo columns.
                act = act * mask_ref[:, :l]
                dst[:, wp + 1 + q0:wp + 1 + q0 + l] = act.astype(dst.dtype)
            else:
                # Emit the band as one lane-dense (Cout, rows*Wo) NCHW slab.
                pieces = []
                for j in range(rows):
                    row = act[:, j * s * wp:j * s * wp + w]      # (Cout, W)
                    if s > 1:                                    # W-subsample
                        row = jnp.dot(row, sel_ref[...],
                                      preferred_element_type=jnp.float32)
                    pieces.append(row)
                slab = jnp.concatenate(pieces, axis=-1)
                o_ref[0, :, r0 * wo:(r0 + rows) * wo] = slab.astype(o_ref.dtype)
            r0 += rows


# ----------------------------------------------------------------------------
# Tiling / VMEM heuristics
# ----------------------------------------------------------------------------
def _vmem_capacity_bytes():
    try:
        return int(pltpu.get_tpu_info().vmem_capacity_bytes)
    except Exception:
        return 64 * 1024 * 1024        # conservative default (v7x)


def _pick_band_rows(h, wp, cin_max, cout, vmem_cap, max_band_rows=None):
    """Output rows processed per band: bounds the live bf16 im2col patch
    matrix (9*Cin x band*Wp) and the f32 accumulator, the dominant per-band
    temporaries, to a fraction of the chip's VMEM."""
    budget = max(1 << 20, vmem_cap // 12)          # ~5 MiB v7x, ~10 MiB v5e/v6e
    per_row = wp * (9 * cin_max * 2 + cout * 4 * 2)
    band = max(1, min(h, budget // max(per_row, 1)))
    band = min(band, 64)                           # bound per-band unroll
    if max_band_rows is not None:
        band = max(1, min(band, max_band_rows))
    return int(band)


# ----------------------------------------------------------------------------
# Wrapper
# ----------------------------------------------------------------------------
def vgg_block_forward(x_nchw, w_mats, strides, negative_slope=0.1,
                      max_band_rows=None):
    """Fused VGG-block forward.

    x_nchw : (N, Cin, H, W) float32
    w_mats : list of bf16 (Cout, 9*Cin_i) im2col weight matrices
    Returns (N, Cout, Ho, Wo) float32 (NCHW)."""
    n, cin0, h, w = x_nchw.shape
    n_layers = len(w_mats)
    cout = w_mats[0].shape[0]
    cins = tuple(m.shape[1] // 9 for m in w_mats)
    assert cins[0] == cin0
    strides = tuple(strides)
    assert len(strides) == n_layers and n_layers >= 1
    assert all(s == 1 for s in strides[:-1]), "only the last conv may stride"
    final_stride = strides[-1]
    ho = (h - 1) // final_stride + 1
    wo = (w - 1) // final_stride + 1
    wp, p = w + 2, (h + 2) * (w + 2)

    # Layout-only wrapper prep: round to bf16 (the MXU operand precision, and
    # what the reference numerics use), zero-pad the 1-pixel halo once and
    # flatten each padded image row-major (free metadata reshape).
    x_flat = jnp.pad(x_nchw.astype(jnp.bfloat16),
                     ((0, 0), (0, 0), (1, 1), (1, 1))).reshape(n, cin0, p)

    inputs = [x_flat]
    in_specs = [pl.BlockSpec((1, cin0, p), lambda b: (b, 0, 0))]
    for m in w_mats:
        inputs.append(m)
        in_specs.append(pl.BlockSpec(m.shape, lambda b: (0, 0)))

    if n_layers >= 2:
        # 0/1 mask that zeroes the 2 junk columns per flattened output row.
        row = jnp.concatenate([jnp.ones((1, w), jnp.bfloat16),
                               jnp.zeros((1, 2), jnp.bfloat16)], axis=1)
        inputs.append(jnp.tile(row, (1, h)))                   # (1, H*Wp)
        in_specs.append(pl.BlockSpec((1, h * wp), lambda b: (0, 0)))
    if final_stride > 1:
        # 0/1 column-selection matrix for the strided last conv's W-subsample.
        sel = (jnp.arange(w)[:, None]
               == jnp.arange(wo)[None, :] * final_stride).astype(jnp.float32)
        inputs.append(sel)                                     # (W, Wo)
        in_specs.append(pl.BlockSpec((w, wo), lambda b: (0, 0)))

    out_specs = pl.BlockSpec((1, cout, ho * wo), lambda b: (b, 0, 0))
    out_shape = jax.ShapeDtypeStruct((n, cout, ho * wo), x_nchw.dtype)

    n_mids = 0 if n_layers == 1 else (1 if n_layers == 2 else 2)
    scratch_shapes = [pltpu.VMEM((cout, p), jnp.bfloat16) for _ in range(n_mids)]

    vmem_cap = _vmem_capacity_bytes()
    band_rows = _pick_band_rows(h, wp, max(cins), cout, vmem_cap, max_band_rows)

    kern = functools.partial(
        _vgg_block_kernel, n_layers=n_layers, h=h, w=w, cins=cins, cout=cout,
        final_stride=final_stride, band_rows=band_rows,
        negative_slope=negative_slope)

    y = pl.pallas_call(
        kern,
        out_shape=out_shape,
        grid_spec=pltpu.PrefetchScalarGridSpec(
            num_scalar_prefetch=0,
            grid=(n,),                              # one image per step
            in_specs=in_specs,
            out_specs=out_specs,
            scratch_shapes=scratch_shapes),
        compiler_params=pltpu.CompilerParams(
            dimension_semantics=("parallel",),
            vmem_limit_bytes=min(int(vmem_cap * 7 // 8), 96 * 1024 * 1024)),
    )(*inputs)

    return y.reshape(n, cout, ho, wo)


# ----------------------------------------------------------------------------
# Module mirror
# ----------------------------------------------------------------------------
class VGGNetBlockPallas:
    """Mirrors VGGNetBlock: (n_convolution-1) stride-1 convs then one
    stride-`stride` conv; each 3x3, padding=1, bias=False, PyTorch default
    (kaiming_uniform) init, LeakyReLU(0.1).  Batch/instance norm are off by
    default in the module and not implemented here."""

    def __init__(self, key, in_channels, out_channels, n_convolution=1,
                 stride=1, negative_slope=0.1):
        self.negative_slope = negative_slope
        self.weights = []   # f32 (3, 3, Cin, Cout) HWIO, for the reference
        self.w_mats = []    # bf16 (Cout, 9*Cin) im2col weights for the kernel
        self.strides = []
        keys = jax.random.split(key, n_convolution)
        c_in = in_channels
        for i in range(n_convolution):
            s = stride if i == n_convolution - 1 else 1
            fan_in = c_in * 9
            # PyTorch default Conv2d init == U(-1/sqrt(fan_in), 1/sqrt(fan_in))
            bound = 1.0 / float(fan_in) ** 0.5
            w_f32 = jax.random.uniform(keys[i], (3, 3, c_in, out_channels),
                                       jnp.float32, -bound, bound)
            self.weights.append(w_f32)
            self.w_mats.append(
                w_f32.reshape(9 * c_in, out_channels).T.astype(jnp.bfloat16))
            self.strides.append(s)
            c_in = out_channels

    def __call__(self, x_nchw, max_band_rows=None):
        return vgg_block_forward(x_nchw, self.w_mats, self.strides,
                                 self.negative_slope,
                                 max_band_rows=max_band_rows)


# ----------------------------------------------------------------------------
# Pure-JAX reference (matches the kernel numerics: bf16 operands, f32 accum)
# ----------------------------------------------------------------------------
def _reference_forward(x_nchw, weights, strides, negative_slope):
    def bf16_round(v):
        return v.astype(jnp.bfloat16).astype(jnp.float32)

    x = x_nchw
    for w, s in zip(weights, strides):
        w_oihw = jnp.transpose(bf16_round(w), (3, 2, 0, 1))
        y = jax.lax.conv_general_dilated(
            bf16_round(x), w_oihw, window_strides=(s, s),
            padding=((1, 1), (1, 1)),
            dimension_numbers=("NCHW", "OIHW", "NCHW"),
            precision=jax.lax.Precision.HIGHEST)
        x = jnp.where(y > 0, y, negative_slope * y)
    return x


if __name__ == "__main__":
    key = jax.random.PRNGKey(0)
    k_x, k_w1, k_w2, k_w3 = jax.random.split(key, 4)

    N, C_in, H, W, C_out = 2, 4, 16, 16, 8
    x = jax.random.normal(k_x, (N, C_in, H, W), jnp.float32)

    # (a) Common ScaffNet case: two 3x3 convs, last one stride-2.
    blk = VGGNetBlockPallas(k_w1, C_in, C_out, n_convolution=2, stride=2)
    out = jax.block_until_ready(blk(x))
    assert out.shape == (N, C_out, H // 2, W // 2), out.shape
    ref = _reference_forward(x, blk.weights, blk.strides, blk.negative_slope)
    err = float(jnp.max(jnp.abs(out - ref)))
    assert jnp.allclose(out, ref, atol=1e-2, rtol=1e-2), err

    # (b) Same block, forcing the multi-band (row-band tiling) path.
    out_b = jax.block_until_ready(blk(x, max_band_rows=4))
    err_b = float(jnp.max(jnp.abs(out_b - ref)))
    assert jnp.allclose(out_b, ref, atol=1e-2, rtol=1e-2), err_b

    # (c) Single conv, stride 1 (module defaults; no intermediate scratch).
    blk1 = VGGNetBlockPallas(k_w2, C_in, C_out, n_convolution=1, stride=1)
    out1 = jax.block_until_ready(blk1(x))
    assert out1.shape == (N, C_out, H, W), out1.shape
    ref1 = _reference_forward(x, blk1.weights, blk1.strides, blk1.negative_slope)
    assert jnp.allclose(out1, ref1, atol=1e-2, rtol=1e-2)

    # (d) Three convs, stride 2 (exercises the ping-pong scratch path).
    blk3 = VGGNetBlockPallas(k_w3, C_in, C_out, n_convolution=3, stride=2)
    out3 = jax.block_until_ready(blk3(x))
    assert out3.shape == (N, C_out, H // 2, W // 2), out3.shape
    ref3 = _reference_forward(x, blk3.weights, blk3.strides, blk3.negative_slope)
    assert jnp.allclose(out3, ref3, atol=1e-2, rtol=1e-2)

    print("KERNEL_OK")
</pallas_src>

<mosaic_0001>
module attributes {stable_mosaic.version = 11 : i64} {
  func.func @_vgg_block_kernel(%arg0: i32, %arg1: memref<1x4x324xbf16, #tpu.memory_space<vmem>>, %arg2: memref<8x36xbf16, #tpu.memory_space<vmem>>, %arg3: memref<8x72xbf16, #tpu.memory_space<vmem>>, %arg4: memref<1x288xbf16, #tpu.memory_space<vmem>>, %arg5: memref<16x8xf32, #tpu.memory_space<vmem>>, %arg6: memref<1x8x64xf32, #tpu.memory_space<vmem>>, %arg7: memref<8x324xbf16, #tpu.memory_space<vmem>>) attributes {dimension_semantics = [#tpu.dimension_semantics<parallel>], iteration_bounds = array<i64: 2>, scalar_prefetch = 0 : i64, scratch_operands = 1 : i64, tpu.core_type = #tpu.core_type<tc>, window_params = [{transform_indices = @transform_0, window_bounds = array<i64: 1, 4, 324>}, {pipeline_mode = #tpu.pipeline_mode<synchronous>, transform_indices = @transform_1, window_bounds = array<i64: 8, 36>}, {pipeline_mode = #tpu.pipeline_mode<synchronous>, transform_indices = @transform_2, window_bounds = array<i64: 8, 72>}, {pipeline_mode = #tpu.pipeline_mode<synchronous>, transform_indices = @transform_3, window_bounds = array<i64: 1, 288>}, {pipeline_mode = #tpu.pipeline_mode<synchronous>, transform_indices = @transform_4, window_bounds = array<i64: 16, 8>}, {transform_indices = @transform_5, window_bounds = array<i64: 1, 8, 64>}]} {
    %cst = arith.constant 0.000000e+00 : bf16
    %0 = vector.broadcast %cst : bf16 to vector<8x19xbf16>
    %c0 = arith.constant 0 : index
    %c0_0 = arith.constant 0 : index
    %1 = vector.load %arg7[%c0, %c0_0] : memref<8x324xbf16, #tpu.memory_space<vmem>>, vector<8x19xbf16>
    tpu.vector_store %arg7[%c0, %c0_0], %0 {strides = array<i32>} : memref<8x324xbf16, #tpu.memory_space<vmem>>, vector<8x19xbf16>,
    %cst_1 = arith.constant 0.000000e+00 : bf16
    %2 = vector.broadcast %cst_1 : bf16 to vector<8x19xbf16>
    %c0_2 = arith.constant 0 : index
    %c305 = arith.constant 305 : index
    %3 = vector.load %arg7[%c0_2, %c305] : memref<8x324xbf16, #tpu.memory_space<vmem>>, vector<8x19xbf16>
    tpu.vector_store %arg7[%c0_2, %c305], %2 {strides = array<i32>} : memref<8x324xbf16, #tpu.memory_space<vmem>>, vector<8x19xbf16>,
    %c0_3 = arith.constant 0 : index
    %c0_4 = arith.constant 0 : index
    %c0_5 = arith.constant 0 : index
    %4 = vector.load %arg1[%c0_3, %c0_4, %c0_5] : memref<1x4x324xbf16, #tpu.memory_space<vmem>>, vector<1x4x286xbf16>
    %5 = vector.shape_cast %4 : vector<1x4x286xbf16> to vector<4x286xbf16>
    %c0_6 = arith.constant 0 : index
    %c0_7 = arith.constant 0 : index
    %c1 = arith.constant 1 : index
    %6 = vector.load %arg1[%c0_6, %c0_7, %c1] : memref<1x4x324xbf16, #tpu.memory_space<vmem>>, vector<1x4x286xbf16>
    %7 = vector.shape_cast %6 : vector<1x4x286xbf16> to vector<4x286xbf16>
    %c0_8 = arith.constant 0 : index
    %c0_9 = arith.constant 0 : index
    %c2 = arith.constant 2 : index
    %8 = vector.load %arg1[%c0_8, %c0_9, %c2] : memref<1x4x324xbf16, #tpu.memory_space<vmem>>, vector<1x4x286xbf16>
    %9 = vector.shape_cast %8 : vector<1x4x286xbf16> to vector<4x286xbf16>
    %c0_10 = arith.constant 0 : index
    %c0_11 = arith.constant 0 : index
    %c18 = arith.constant 18 : index
    %10 = vector.load %arg1[%c0_10, %c0_11, %c18] : memref<1x4x324xbf16, #tpu.memory_space<vmem>>, vector<1x4x286xbf16>
    %11 = vector.shape_cast %10 : vector<1x4x286xbf16> to vector<4x286xbf16>
    %c0_12 = arith.constant 0 : index
    %c0_13 = arith.constant 0 : index
    %c19 = arith.constant 19 : index
    %12 = vector.load %arg1[%c0_12, %c0_13, %c19] : memref<1x4x324xbf16, #tpu.memory_space<vmem>>, vector<1x4x286xbf16>
    %13 = vector.shape_cast %12 : vector<1x4x286xbf16> to vector<4x286xbf16>
    %c0_14 = arith.constant 0 : index
    %c0_15 = arith.constant 0 : index
    %c20 = arith.constant 20 : index
    %14 = vector.load %arg1[%c0_14, %c0_15, %c20] : memref<1x4x324xbf16, #tpu.memory_space<vmem>>, vector<1x4x286xbf16>
    %15 = vector.shape_cast %14 : vector<1x4x286xbf16> to vector<4x286xbf16>
    %c0_16 = arith.constant 0 : index
    %c0_17 = arith.constant 0 : index
    %c36 = arith.constant 36 : index
    %16 = vector.load %arg1[%c0_16, %c0_17, %c36] : memref<1x4x324xbf16, #tpu.memory_space<vmem>>, vector<1x4x286xbf16>
    %17 = vector.shape_cast %16 : vector<1x4x286xbf16> to vector<4x286xbf16>
    %c0_18 = arith.constant 0 : index
    %c0_19 = arith.constant 0 : index
    %c37 = arith.constant 37 : index
    %18 = vector.load %arg1[%c0_18, %c0_19, %c37] : memref<1x4x324xbf16, #tpu.memory_space<vmem>>, vector<1x4x286xbf16>
    %19 = vector.shape_cast %18 : vector<1x4x286xbf16> to vector<4x286xbf16>
    %c0_20 = arith.constant 0 : index
    %c0_21 = arith.constant 0 : index
    %c38 = arith.constant 38 : index
    %20 = vector.load %arg1[%c0_20, %c0_21, %c38] : memref<1x4x324xbf16, #tpu.memory_space<vmem>>, vector<1x4x286xbf16>
    %21 = vector.shape_cast %20 : vector<1x4x286xbf16> to vector<4x286xbf16>
    %22 = tpu.concatenate %5, %7, %9, %11, %13, %15, %17, %19, %21 in 0 : vector<4x286xbf16>, vector<4x286xbf16>, vector<4x286xbf16>, vector<4x286xbf16>, vector<4x286xbf16>, vector<4x286xbf16>, vector<4x286xbf16>, vector<4x286xbf16>, vector<4x286xbf16> -> vector<36x286xbf16>
    %c0_22 = arith.constant 0 : index
    %c0_23 = arith.constant 0 : index
    %23 = vector.load %arg2[%c0_22, %c0_23] : memref<8x36xbf16, #tpu.memory_space<vmem>>, vector<8x36xbf16>
    %cst_24 = arith.constant dense<0.000000e+00> : vector<8x286xf32>
    %24 = tpu.matmul %23, %22, %cst_24 {dimension_numbers = #tpu.dot_dimension_numbers<[1], [0], [0], [1], [0, 0, 1, 1], [], []>} : vector<8x36xbf16>, vector<36x286xbf16>, vector<8x286xf32> -> vector<8x286xf32>
    %cst_25 = arith.constant 0.000000e+00 : f32
    %25 = vector.broadcast %cst_25 : f32 to vector<8x286xf32>
    %26 = arith.cmpf ogt, %24, %25 : vector<8x286xf32>
    %cst_26 = arith.constant 1.000000e-01 : f32
    %27 = vector.broadcast %cst_26 : f32 to vector<8x286xf32>
    %28 = arith.mulf %27, %24 : vector<8x286xf32>
    %29 = arith.select %26, %24, %28 : vector<8x286xi1>, vector<8x286xf32>
    %c0_27 = arith.constant 0 : index
    %c0_28 = arith.constant 0 : index
    %30 = vector.load %arg4[%c0_27, %c0_28] : memref<1x288xbf16, #tpu.memory_space<vmem>>, vector<1x286xbf16>
    %31 = arith.extf %30 : vector<1x286xbf16> to vector<1x286xf32>
    %32 = vector.broadcast %31 : vector<1x286xf32> to vector<8x286xf32>
    %33 = arith.mulf %29, %32 : vector<8x286xf32>
    %34 = arith.truncf %33 : vector<8x286xf32> to vector<8x286xbf16>
    %c0_29 = arith.constant 0 : index
    %c19_30 = arith.constant 19 : index
    %35 = vector.load %arg7[%c0_29, %c19_30] : memref<8x324xbf16, #tpu.memory_space<vmem>>, vector<8x286xbf16>
    tpu.vector_store %arg7[%c0_29, %c19_30], %34 {strides = array<i32>} : memref<8x324xbf16, #tpu.memory_space<vmem>>, vector<8x286xbf16>,
    %c0_31 = arith.constant 0 : index
    %c0_32 = arith.constant 0 : index
    %36 = vector.load %arg7[%c0_31, %c0_32] : memref<8x324xbf16, #tpu.memory_space<vmem>>, vector<8x268xbf16>
    %c0_33 = arith.constant 0 : index
    %c1_34 = arith.constant 1 : index
    %37 = vector.load %arg7[%c0_33, %c1_34] : memref<8x324xbf16, #tpu.memory_space<vmem>>, vector<8x268xbf16>
    %c0_35 = arith.constant 0 : index
    %c2_36 = arith.constant 2 : index
    %38 = vector.load %arg7[%c0_35, %c2_36] : memref<8x324xbf16, #tpu.memory_space<vmem>>, vector<8x268xbf16>
    %c0_37 = arith.constant 0 : index
    %c18_38 = arith.constant 18 : index
    %39 = vector.load %arg7[%c0_37, %c18_38] : memref<8x324xbf16, #tpu.memory_space<vmem>>, vector<8x268xbf16>
    %c0_39 = arith.constant 0 : index
    %c19_40 = arith.constant 19 : index
    %40 = vector.load %arg7[%c0_39, %c19_40] : memref<8x324xbf16, #tpu.memory_space<vmem>>, vector<8x268xbf16>
    %c0_41 = arith.constant 0 : index
    %c20_42 = arith.constant 20 : index
    %41 = vector.load %arg7[%c0_41, %c20_42] : memref<8x324xbf16, #tpu.memory_space<vmem>>, vector<8x268xbf16>
    %c0_43 = arith.constant 0 : index
    %c36_44 = arith.constant 36 : index
    %42 = vector.load %arg7[%c0_43, %c36_44] : memref<8x324xbf16, #tpu.memory_space<vmem>>, vector<8x268xbf16>
    %c0_45 = arith.constant 0 : index
    %c37_46 = arith.constant 37 : index
    %43 = vector.load %arg7[%c0_45, %c37_46] : memref<8x324xbf16, #tpu.memory_space<vmem>>, vector<8x268xbf16>
    %c0_47 = arith.constant 0 : index
    %c38_48 = arith.constant 38 : index
    %44 = vector.load %arg7[%c0_47, %c38_48] : memref<8x324xbf16, #tpu.memory_space<vmem>>, vector<8x268xbf16>
    %45 = tpu.concatenate %36, %37, %38, %39, %40, %41, %42, %43, %44 in 0 : vector<8x268xbf16>, vector<8x268xbf16>, vector<8x268xbf16>, vector<8x268xbf16>, vector<8x268xbf16>, vector<8x268xbf16>, vector<8x268xbf16>, vector<8x268xbf16>, vector<8x268xbf16> -> vector<72x268xbf16>
    %c0_49 = arith.constant 0 : index
    %c0_50 = arith.constant 0 : index
    %46 = vector.load %arg3[%c0_49, %c0_50] : memref<8x72xbf16, #tpu.memory_space<vmem>>, vector<8x72xbf16>
    %cst_51 = arith.constant dense<0.000000e+00> : vector<8x268xf32>
    %47 = tpu.matmul %46, %45, %cst_51 {dimension_numbers = #tpu.dot_dimension_numbers<[1], [0], [0], [1], [0, 0, 1, 1], [], []>} : vector<8x72xbf16>, vector<72x268xbf16>, vector<8x268xf32> -> vector<8x268xf32>
    %cst_52 = arith.constant 0.000000e+00 : f32
    %48 = vector.broadcast %cst_52 : f32 to vector<8x268xf32>
    %49 = arith.cmpf ogt, %47, %48 : vector<8x268xf32>
    %cst_53 = arith.constant 1.000000e-01 : f32
    %50 = vector.broadcast %cst_53 : f32 to vector<8x268xf32>
    %51 = arith.mulf %50, %47 : vector<8x268xf32>
    %52 = arith.select %49, %47, %51 : vector<8x268xi1>, vector<8x268xf32>
    %53 = vector.extract_strided_slice %52 {offsets = [0, 0], sizes = [8, 16], strides = [1, 1]} : vector<8x268xf32> to vector<8x16xf32>
    %c0_54 = arith.constant 0 : index
    %c0_55 = arith.constant 0 : index
    %54 = vector.load %arg5[%c0_54, %c0_55] : memref<16x8xf32, #tpu.memory_space<vmem>>, vector<16x8xf32>
    %cst_56 = arith.constant dense<0.000000e+00> : vector<8x8xf32>
    %55 = tpu.matmul %53, %54, %cst_56 {dimension_numbers = #tpu.dot_dimension_numbers<[1], [0], [0], [1], [0, 0, 1, 1], [], []>} : vector<8x16xf32>, vector<16x8xf32>, vector<8x8xf32> -> vector<8x8xf32>
    %56 = vector.extract_strided_slice %52 {offsets = [0, 36], sizes = [8, 16], strides = [1, 1]} : vector<8x268xf32> to vector<8x16xf32>
    %c0_57 = arith.constant 0 : index
    %c0_58 = arith.constant 0 : index
    %57 = vector.load %arg5[%c0_57, %c0_58] : memref<16x8xf32, #tpu.memory_space<vmem>>, vector<16x8xf32>
    %cst_59 = arith.constant dense<0.000000e+00> : vector<8x8xf32>
    %58 = tpu.matmul %56, %57, %cst_59 {dimension_numbers = #tpu.dot_dimension_numbers<[1], [0], [0], [1], [0, 0, 1, 1], [], []>} : vector<8x16xf32>, vector<16x8xf32>, vector<8x8xf32> -> vector<8x8xf32>
    %59 = vector.extract_strided_slice %52 {offsets = [0, 72], sizes = [8, 16], strides = [1, 1]} : vector<8x268xf32> to vector<8x16xf32>
    %c0_60 = arith.constant 0 : index
    %c0_61 = arith.constant 0 : index
    %60 = vector.load %arg5[%c0_60, %c0_61] : memref<16x8xf32, #tpu.memory_space<vmem>>, vector<16x8xf32>
    %cst_62 = arith.constant dense<0.000000e+00> : vector<8x8xf32>
    %61 = tpu.matmul %59, %60, %cst_62 {dimension_numbers = #tpu.dot_dimension_numbers<[1], [0], [0], [1], [0, 0, 1, 1], [], []>} : vector<8x16xf32>, vector<16x8xf32>, vector<8x8xf32> -> vector<8x8xf32>
    %62 = vector.extract_strided_slice %52 {offsets = [0, 108], sizes = [8, 16], strides = [1, 1]} : vector<8x268xf32> to vector<8x16xf32>
    %c0_63 = arith.constant 0 : index
    %c0_64 = arith.constant 0 : index
    %63 = vector.load %arg5[%c0_63, %c0_64] : memref<16x8xf32, #tpu.memory_space<vmem>>, vector<16x8xf32>
    %cst_65 = arith.constant dense<0.000000e+00> : vector<8x8xf32>
    %64 = tpu.matmul %62, %63, %cst_65 {dimension_numbers = #tpu.dot_dimension_numbers<[1], [0], [0], [1], [0, 0, 1, 1], [], []>} : vector<8x16xf32>, vector<16x8xf32>, vector<8x8xf32> -> vector<8x8xf32>
    %65 = vector.extract_strided_slice %52 {offsets = [0, 144], sizes = [8, 16], strides = [1, 1]} : vector<8x268xf32> to vector<8x16xf32>
    %c0_66 = arith.constant 0 : index
    %c0_67 = arith.constant 0 : index
    %66 = vector.load %arg5[%c0_66, %c0_67] : memref<16x8xf32, #tpu.memory_space<vmem>>, vector<16x8xf32>
    %cst_68 = arith.constant dense<0.000000e+00> : vector<8x8xf32>
    %67 = tpu.matmul %65, %66, %cst_68 {dimension_numbers = #tpu.dot_dimension_numbers<[1], [0], [0], [1], [0, 0, 1, 1], [], []>} : vector<8x16xf32>, vector<16x8xf32>, vector<8x8xf32> -> vector<8x8xf32>
    %68 = vector.extract_strided_slice %52 {offsets = [0, 180], sizes = [8, 16], strides = [1, 1]} : vector<8x268xf32> to vector<8x16xf32>
    %c0_69 = arith.constant 0 : index
    %c0_70 = arith.constant 0 : index
    %69 = vector.load %arg5[%c0_69, %c0_70] : memref<16x8xf32, #tpu.memory_space<vmem>>, vector<16x8xf32>
    %cst_71 = arith.constant dense<0.000000e+00> : vector<8x8xf32>
    %70 = tpu.matmul %68, %69, %cst_71 {dimension_numbers = #tpu.dot_dimension_numbers<[1], [0], [0], [1], [0, 0, 1, 1], [], []>} : vector<8x16xf32>, vector<16x8xf32>, vector<8x8xf32> -> vector<8x8xf32>
    %71 = vector.extract_strided_slice %52 {offsets = [0, 216], sizes = [8, 16], strides = [1, 1]} : vector<8x268xf32> to vector<8x16xf32>
    %c0_72 = arith.constant 0 : index
    %c0_73 = arith.constant 0 : index
    %72 = vector.load %arg5[%c0_72, %c0_73] : memref<16x8xf32, #tpu.memory_space<vmem>>, vector<16x8xf32>
    %cst_74 = arith.constant dense<0.000000e+00> : vector<8x8xf32>
    %73 = tpu.matmul %71, %72, %cst_74 {dimension_numbers = #tpu.dot_dimension_numbers<[1], [0], [0], [1], [0, 0, 1, 1], [], []>} : vector<8x16xf32>, vector<16x8xf32>, vector<8x8xf32> -> vector<8x8xf32>
    %74 = vector.extract_strided_slice %52 {offsets = [0, 252], sizes = [8, 16], strides = [1, 1]} : vector<8x268xf32> to vector<8x16xf32>
    %c0_75 = arith.constant 0 : index
    %c0_76 = arith.constant 0 : index
    %75 = vector.load %arg5[%c0_75, %c0_76] : memref<16x8xf32, #tpu.memory_space<vmem>>, vector<16x8xf32>
    %cst_77 = arith.constant dense<0.000000e+00> : vector<8x8xf32>
    %76 = tpu.matmul %74, %75, %cst_77 {dimension_numbers = #tpu.dot_dimension_numbers<[1], [0], [0], [1], [0, 0, 1, 1], [], []>} : vector<8x16xf32>, vector<16x8xf32>, vector<8x8xf32> -> vector<8x8xf32>
    %77 = tpu.concatenate %55, %58, %61, %64, %67, %70, %73, %76 in 1 : vector<8x8xf32>, vector<8x8xf32>, vector<8x8xf32>, vector<8x8xf32>, vector<8x8xf32>, vector<8x8xf32>, vector<8x8xf32>, vector<8x8xf32> -> vector<8x64xf32>
    %c0_78 = arith.constant 0 : index
    %c0_79 = arith.constant 0 : index
    %c0_80 = arith.constant 0 : index
    %78 = vector.load %arg6[%c0_78, %c0_79, %c0_80] : memref<1x8x64xf32, #tpu.memory_space<vmem>>, vector<1x8x64xf32>
    %79 = vector.shape_cast %78 : vector<1x8x64xf32> to vector<8x64xf32>
    %80 = vector.shape_cast %77 : vector<8x64xf32> to vector<1x8x64xf32>
    tpu.vector_store %arg6[%c0_78, %c0_79, %c0_80], %80 {strides = array<i32>} : memref<1x8x64xf32, #tpu.memory_space<vmem>>, vector<1x8x64xf32>,
    return
  }
  func.func @transform_0(%arg0: i32) -> (i32, i32, i32) {
    %c0_i32 = arith.constant 0 : i32
    %c0_i32_0 = arith.constant 0 : i32
    %c0_i32_1 = arith.constant 0 : i32
    return %arg0, %c0_i32, %c0_i32_0 : i32, i32, i32
  }
  func.func @transform_1(%arg0: i32) -> (i32, i32) {
    %c0_i32 = arith.constant 0 : i32
    %c0_i32_0 = arith.constant 0 : i32
    %c0_i32_1 = arith.constant 0 : i32
    return %c0_i32, %c0_i32_0 : i32, i32
  }
  func.func @transform_2(%arg0: i32) -> (i32, i32) {
    %c0_i32 = arith.constant 0 : i32
    %c0_i32_0 = arith.constant 0 : i32
    %c0_i32_1 = arith.constant 0 : i32
    return %c0_i32, %c0_i32_0 : i32, i32
  }
  func.func @transform_3(%arg0: i32) -> (i32, i32) {
    %c0_i32 = arith.constant 0 : i32
    %c0_i32_0 = arith.constant 0 : i32
    %c0_i32_1 = arith.constant 0 : i32
    return %c0_i32, %c0_i32_0 : i32, i32
  }
  func.func @transform_4(%arg0: i32) -> (i32, i32) {
    %c0_i32 = arith.constant 0 : i32
    %c0_i32_0 = arith.constant 0 : i32
    %c0_i32_1 = arith.constant 0 : i32
    return %c0_i32, %c0_i32_0 : i32, i32
  }
  func.func @transform_5(%arg0: i32) -> (i32, i32, i32) {
    %c0_i32 = arith.constant 0 : i32
    %c0_i32_0 = arith.constant 0 : i32
    %c0_i32_1 = arith.constant 0 : i32
    return %arg0, %c0_i32, %c0_i32_0 : i32, i32, i32
  }
}

</mosaic_0001>

<llo_original>
// kernel: tpu_custom_call.1
$region0: #{tpu_custom_call.1}
  #allocation0 [shape = 'u32[]', space=smem, size = 0x4, offset = 0x4, fixed_abs, tag = 'smem constant byte address 0x4 - core index']
  #allocation1 [shape = 'u32[144,128]{1,0:T(1,128)}', space=vmem, size = 0x12000, scoped, tag = 'internal scratch']
  #allocation2 [shape = 'bf16[8,324]{1,0:T(8,128)(2,1)}', space=vmem, size = 0x1800, scoped, tag = 'scratch operand']
  %s0 = inlined_call_operand.vmem [shape: bf16[2,4,324], index: 0, kind: input, shape index: {}]
  %s1 = inlined_call_operand.vmem [shape: bf16[8,36], index: 1, kind: input, shape index: {}]
  %s2 = inlined_call_operand.vmem [shape: bf16[8,72], index: 2, kind: input, shape index: {}]
  %s3 = inlined_call_operand.vmem [shape: bf16[1,288], index: 3, kind: input, shape index: {}]
  %s4 = inlined_call_operand.vmem [shape: f32[16,8], index: 4, kind: input, shape index: {}]
  %s5 = inlined_call_operand.hbm [shape: f32[2,8,64], index: 5, kind: output, shape index: {}]
  %s6 = sld [smem:[#allocation0]]
  $region53: #{tpu_custom_call.1} parent=0
    _
  %s8 = ssub.s32 1, %s6
  %s9 = scalar_select 0, %s8, %s6
  $region1: #{tpu_custom_call.1} parent=0
    #allocation3 [shape = 'u8[8192]{0}', space=vmem, size = 0x2000, scoped, tag = 'output window, operand 0']
    #allocation4 [shape = 's32[2]{0}', space=sflag, size = 0x8, scoped, tag = 'scoped memory for tpu_custom_call.1']
    %10 = vsyncpa [#allocation4], 0
    %s11 = scalar_lea.sflag [#allocation4], 1
    %12 = vsyncpa %s11, 0
    loop: start=0, step=1, limit=4
    $region2: #{tpu_custom_call.1} parent=1 // loop_pre_header
      _
    $region3: #{tpu_custom_call.1} parent=1 // loop_header
      %s14 = sphi 0, %s18
      %p15 = scmp.ge.s32.totalorder %s14, 4
      %s24 = sphi 0, %s26
      %s27 = sphi 0, %s24
      %s28 = sphi 0, %s27
      %s44 = sphi 0, %s28
      %s48 = sphi 0, %s48
      %s50 = sphi 0, %s48
      %s51 = sphi 0, %s50
      %s65 = sphi 0, %s51
      %s69 = sphi 0, %s69
      %s71 = sphi 0, %s69
      %s72 = sphi 0, %s71
      %s86 = sphi 0, %s72
      %s90 = sphi 0, %s90
      %s92 = sphi 0, %s90
      %s93 = sphi 0, %s92
      %s107 = sphi 0, %s93
      %s111 = sphi 0, %s111
      %s113 = sphi 0, %s111
      %s114 = sphi 0, %s113
      %s128 = sphi 0, %s114
      %s134 = sphi 0, %s136
      %s137 = sphi 0, %s134
      %s138 = sphi 0, %s137
      %s154 = sphi 0, %s138
    $region4: #{tpu_custom_call.1} parent=1 // loop_header_branch
      %17 = sbr.rel (%p15) target = $region8
    $region5: #{tpu_custom_call.1} parent=1 // loop_body
      %s19 = ssub.s32 %s14, 1
      %s20 = ssub.s32 %s14, 2
      %s21 = sadd.s32 %s14, 1
      %s22 = ssub.s32 %s14, %s21
      %p23 = scmp.eq.s32.totalorder %s22, 0
      %s25 = sadd.s32 %s24, 1
      %s26 = scalar_select %p23, %s24, %s25
      %p29 = pneg %p23
      %p30 = scmp.eq.s32.totalorder %s14, 1
      %p31 = por %p29, %p30
      %p32 = scmp.ne.s32.totalorder %s24, %s27
      %p33 = scmp.eq.s32.totalorder %s14, 0
      %p34 = por %p32, %p33
      %p35 = scmp.ne.s32.totalorder %s24, %s27
      %p36 = scmp.eq.s32.totalorder %s19, 1
      %p37 = por %p35, %p36
      %p38 = scmp.ne.s32.totalorder %s27, %s28
      %p39 = scmp.eq.s32.totalorder %s19, 0
      %p40 = por %p38, %p39
      %p41 = scmp.ne.s32.totalorder %s27, %s28
      %p42 = scmp.eq.s32.totalorder %s20, 1
      %p43 = por %p41, %p42
      %p45 = scmp.ne.s32.totalorder %s28, %s44
      %p46 = scmp.eq.s32.totalorder %s20, 0
      %p47 = por %p45, %p46
      %s49 = sadd.s32 %s48, 1
      %p52 = scmp.eq.s32.totalorder %s14, 1
      %p53 = scmp.ne.s32.totalorder %s48, %s50
      %p54 = scmp.eq.s32.totalorder %s14, 0
      %p55 = por %p53, %p54
      %p56 = scmp.ne.s32.totalorder %s48, %s50
      %p57 = scmp.eq.s32.totalorder %s19, 1
      %p58 = por %p56, %p57
      %p59 = scmp.ne.s32.totalorder %s50, %s51
      %p60 = scmp.eq.s32.totalorder %s19, 0
      %p61 = por %p59, %p60
      %p62 = scmp.ne.s32.totalorder %s50, %s51
      %p63 = scmp.eq.s32.totalorder %s20, 1
      %p64 = por %p62, %p63
      %p66 = scmp.ne.s32.totalorder %s51, %s65
      %p67 = scmp.eq.s32.totalorder %s20, 0
      %p68 = por %p66, %p67
      %s70 = sadd.s32 %s69, 1
      %p73 = scmp.eq.s32.totalorder %s14, 1
      %p74 = scmp.ne.s32.totalorder %s69, %s71
      %p75 = scmp.eq.s32.totalorder %s14, 0
      %p76 = por %p74, %p75
      %p77 = scmp.ne.s32.totalorder %s69, %s71
      %p78 = scmp.eq.s32.totalorder %s19, 1
      %p79 = por %p77, %p78
      %p80 = scmp.ne.s32.totalorder %s71, %s72
      %p81 = scmp.eq.s32.totalorder %s19, 0
      %p82 = por %p80, %p81
      %p83 = scmp.ne.s32.totalorder %s71, %s72
      %p84 = scmp.eq.s32.totalorder %s20, 1
      %p85 = por %p83, %p84
      %p87 = scmp.ne.s32.totalorder %s72, %s86
      %p88 = scmp.eq.s32.totalorder %s20, 0
      %p89 = por %p87, %p88
      %s91 = sadd.s32 %s90, 1
      %p94 = scmp.eq.s32.totalorder %s14, 1
      %p95 = scmp.ne.s32.totalorder %s90, %s92
      %p96 = scmp.eq.s32.totalorder %s14, 0
      %p97 = por %p95, %p96
      %p98 = scmp.ne.s32.totalorder %s90, %s92
      %p99 = scmp.eq.s32.totalorder %s19, 1
      %p100 = por %p98, %p99
      %p101 = scmp.ne.s32.totalorder %s92, %s93
      %p102 = scmp.eq.s32.totalorder %s19, 0
      %p103 = por %p101, %p102
      %p104 = scmp.ne.s32.totalorder %s92, %s93
      %p105 = scmp.eq.s32.totalorder %s20, 1
      %p106 = por %p104, %p105
      %p108 = scmp.ne.s32.totalorder %s93, %s107
      %p109 = scmp.eq.s32.totalorder %s20, 0
      %p110 = por %p108, %p109
      %s112 = sadd.s32 %s111, 1
      %p115 = scmp.eq.s32.totalorder %s14, 1
      %p116 = scmp.ne.s32.totalorder %s111, %s113
      %p117 = scmp.eq.s32.totalorder %s14, 0
      %p118 = por %p116, %p117
      %p119 = scmp.ne.s32.totalorder %s111, %s113
      %p120 = scmp.eq.s32.totalorder %s19, 1
      %p121 = por %p119, %p120
      %p122 = scmp.ne.s32.totalorder %s113, %s114
      %p123 = scmp.eq.s32.totalorder %s19, 0
      %p124 = por %p122, %p123
      %p125 = scmp.ne.s32.totalorder %s113, %s114
      %p126 = scmp.eq.s32.totalorder %s20, 1
      %p127 = por %p125, %p126
      %p129 = scmp.ne.s32.totalorder %s114, %s128
      %p130 = scmp.eq.s32.totalorder %s20, 0
      %p131 = por %p129, %p130
      %s132 = ssub.s32 %s14, %s21
      %p133 = scmp.eq.s32.totalorder %s132, 0
      %s135 = sadd.s32 %s134, 1
      %s136 = scalar_select %p133, %s134, %s135
      %p139 = pneg %p133
      %p140 = scmp.eq.s32.totalorder %s14, 1
      %p141 = por %p139, %p140
      %p142 = scmp.ne.s32.totalorder %s134, %s137
      %p143 = scmp.eq.s32.totalorder %s14, 0
      %p144 = por %p142, %p143
      %p145 = scmp.ne.s32.totalorder %s134, %s137
      %p146 = scmp.eq.s32.totalorder %s19, 1
      %p147 = por %p145, %p146
      %p148 = scmp.ne.s32.totalorder %s137, %s138
      %p149 = scmp.eq.s32.totalorder %s19, 0
      %p150 = por %p148, %p149
      %p151 = scmp.ne.s32.totalorder %s137, %s138
      %p152 = scmp.eq.s32.totalorder %s20, 1
      %p153 = por %p151, %p152
      %p155 = scmp.ne.s32.totalorder %s138, %s154
      %p156 = scmp.eq.s32.totalorder %s20, 0
      %p157 = por %p155, %p156
      %p158 = scmp.le.s32.totalorder 1, %s14
      %p159 = scmp.lt.s32.totalorder %s14, 3
      %p160 = pnand %p158, %p159
      %p161 = pneg %p160
      // Predicated region
      $region9: #{tpu_custom_call.1} parent=5 // pred_check
        _
      $region10: #{tpu_custom_call.1} parent=5 // pred_check_branch
        %163 = sbr.rel (%p160) target = $region12
      $region11: #{tpu_custom_call.1} parent=5 // pred_region
        %s164 = ssub.s32 %s14, 1
        // Predicated region
        $region13: #{tpu_custom_call.1} parent=11 // pred_check
          %p165 = pneg %p61
        $region14: #{tpu_custom_call.1} parent=11 // pred_check_branch
          %167 = sbr.rel (%p165) target = $region16
        $region15: #{tpu_custom_call.1} parent=11 // pred_region
          _
        $region16: #{tpu_custom_call.1} parent=11 // pred_fallthru
          _
        // Predicated region
        $region17: #{tpu_custom_call.1} parent=11 // pred_check
          %p168 = pneg %p82
        $region18: #{tpu_custom_call.1} parent=11 // pred_check_branch
          %170 = sbr.rel (%p168) target = $region20
        $region19: #{tpu_custom_call.1} parent=11 // pred_region
          _
        $region20: #{tpu_custom_call.1} parent=11 // pred_fallthru
          _
        // Predicated region
        $region21: #{tpu_custom_call.1} parent=11 // pred_check
          %p171 = pneg %p103
        $region22: #{tpu_custom_call.1} parent=11 // pred_check_branch
          %173 = sbr.rel (%p171) target = $region24
        $region23: #{tpu_custom_call.1} parent=11 // pred_region
          _
        $region24: #{tpu_custom_call.1} parent=11 // pred_fallthru
          _
        // Predicated region
        $region25: #{tpu_custom_call.1} parent=11 // pred_check
          %p174 = pneg %p124
        $region26: #{tpu_custom_call.1} parent=11 // pred_check_branch
          %176 = sbr.rel (%p174) target = $region28
        $region27: #{tpu_custom_call.1} parent=11 // pred_region
          _
        $region28: #{tpu_custom_call.1} parent=11 // pred_fallthru
          _
      $region12: #{tpu_custom_call.1} parent=5 // pred_fallthru
        _
      %p177 = scmp.lt.s32.totalorder %s14, 2
      // Predicated region
      $region29: #{tpu_custom_call.1} parent=5 // pred_check
        %p178 = pneg %p177
      $region30: #{tpu_custom_call.1} parent=5 // pred_check_branch
        %180 = sbr.rel (%p178) target = $region32
      $region31: #{tpu_custom_call.1} parent=5 // pred_region
        // Predicated region
        $region33: #{tpu_custom_call.1} parent=31 // pred_check
          %p181 = pneg %p34
        $region34: #{tpu_custom_call.1} parent=31 // pred_check_branch
          %183 = sbr.rel (%p181) target = $region36
        $region35: #{tpu_custom_call.1} parent=31 // pred_region
          %p184 = scmp.lt.s32.totalorder %s14, 1
          %s185 = scalar_select %p184, %s14, 1
          %s186 = smul.addr %s185, 3
          %s187 = smul.addr %s186, 2
          %s188 = scalar_lea.vmem %s0, %s187
        $region36: #{tpu_custom_call.1} parent=31 // pred_fallthru
          _
      $region32: #{tpu_custom_call.1} parent=5 // pred_fallthru
        _
      %p189 = scmp.le.s32.totalorder 1, %s14
      %p190 = scmp.lt.s32.totalorder %s14, 3
      %p191 = pnand %p189, %p190
      %p192 = pneg %p191
      // Predicated region
      $region37: #{tpu_custom_call.1} parent=5 // pred_check
        _
      $region38: #{tpu_custom_call.1} parent=5 // pred_check_branch
        %194 = sbr.rel (%p191) target = $region40
      $region39: #{tpu_custom_call.1} parent=5 // pred_region
        %s195 = ssub.s32 %s14, 1
        %p196 = scmp.lt.s32.totalorder %s19, 1
        %s197 = scalar_select %p196, %s19, 1
        %s198 = smul.addr %s197, 3
        %s199 = smul.addr %s198, 2
        %s200 = scalar_lea.vmem %s0, %s199
        %p201 = pneg %p40
        %p202 = pneg %p37
        %p203 = pneg %p61
        %p204 = pneg %p58
        %p205 = pneg %p82
        %p206 = pneg %p79
        %p207 = pneg %p103
        %p208 = pneg %p100
        %p209 = pneg %p124
        %p210 = pneg %p121
        %p211 = pneg %p150
        %p212 = pneg %p147
        %s213 = sand.u32 %s137, 1
        %s214 = scalar_lea.sflag [#allocation4], %s213
        %s215 = sand.u32 %s137, 1
        %s216 = smul.addr %s215, 8
        %s217 = scalar_lea.vmem [#allocation3], %s216
        %p218 = scmp.lt.s32.totalorder %s19, 1
        %s219 = scalar_select %p218, %s19, 1
        %s220 = smul.addr %s219, 3
        %s221 = smul.addr %s220, 2
        %s222 = scalar_lea.vmem %s0, %s221
        %vm224 = vcmask 150528
        %225 = vst.msk [vmem:[#allocation2] sm:$0xf] %vm224, 0
        %vm226 = vcmask 552328
        %227 = vst.msk [vmem:[#allocation2 + $0x8] sm:$0xf] %vm226, 0
        %v228 = vld [vmem:[%s222] sm:$0x3f]
        %v230 = vcombine.high %v228, %v228
        %v232 = vunpack.c.l.s4 1983009808
        %v233 = vunpack.c.0.s8 %v232
        %v234 = vlaneseq
        %v235 = vshrl.u32 %v234, 7
        %v236 = vsub.s32 %v233, %v235
        %v237 = vrot.slane %v228, %v236
        %v239 = vunpack.c.l.s4 1983009808
        %v240 = vunpack.c.0.s8 %v239
        %v241 = vlaneseq
        %v242 = vshrl.u32 %v241, 7
        %v243 = vsub.s32 %v240, %v242
        %v244 = vrot.slane %v230, %v243
        %v245 = vcombine.high %v237, %v237
        %v246 = vcombine.low %v228, %v228
        %v248 = vunpack.c.l.s4 1983009808
        %v249 = vunpack.c.0.s8 %v248
        %v250 = vlaneseq
        %v251 = vshrl.u32 %v250, 7
        %v252 = vsub.s32 %v249, %v251
        %v253 = vrot.slane %v246, %v252
        %v254 = vcombine.high %v253, %v253
        %255 = vrot.lane.b32.xlu0 %v253, 127
        %v256 = vpop.permute.xlu0 %255
        %257 = vrot.lane.b32.xlu0 %v254, 127
        %v258 = vpop.permute.xlu0 %257
        %259 = vrot.lane.b32.xlu0 %v237, 127
        %v260 = vpop.permute.xlu0 %259
        %vm261 = vcmask 1039360
        %v262 = vsel %vm261, %v256, %v258
        %v263 = vsel %vm261, %v258, %v260
        %v264 = vcombine.low %v237, %v237
        %v265 = vcombine.low %v244, %v244
        %266 = vrot.lane.b32.xlu0 %v264, 126
        %v267 = vpop.permute.xlu0 %266
        %268 = vrot.lane.b32.xlu0 %v237, 126
        %v269 = vpop.permute.xlu0 %268
        %270 = vrot.lane.b32.xlu0 %v265, 126
        %v271 = vpop.permute.xlu0 %270
        %vm272 = vcmask 1031168
        %v273 = vsel %vm272, %v267, %v269
        %v274 = vsel %vm272, %v269, %v271
        %v275 = vcombine.low %v253, %v253
        %276 = vrot.lane.b32.xlu0 %v275, 110
        %v277 = vpop.permute.xlu0 %276
        %278 = vrot.lane.b32.xlu0 %v253, 110
        %v279 = vpop.permute.xlu0 %278
        %280 = vrot.lane.b32.xlu0 %v264, 110
        %v281 = vpop.permute.xlu0 %280
        %vm282 = vcmask 900096
        %v283 = vsel %vm282, %v277, %v279
        %v284 = vsel %vm282, %v279, %v281
        %285 = vrot.lane.b32.xlu0 %v237, 109
        %v286 = vpop.permute.xlu0 %285
        %287 = vrot.lane.b32.xlu0 %v245, 109
        %v288 = vpop.permute.xlu0 %287
        %289 = vrot.lane.b32.xlu0 %v244, 109
        %v290 = vpop.permute.xlu0 %289
        %vm291 = vcmask 891904
        %v292 = vsel %vm291, %v286, %v288
        %v293 = vsel %vm291, %v288, %v290
        %294 = vrot.lane.b32.xlu0 %v253, 108
        %v295 = vpop.permute.xlu0 %294
        %296 = vrot.lane.b32.xlu0 %v254, 108
        %v297 = vpop.permute.xlu0 %296
        %298 = vrot.lane.b32.xlu0 %v237, 108
        %v299 = vpop.permute.xlu0 %298
        %vm300 = vcmask 883712
        %v301 = vsel %vm300, %v295, %v297
        %v302 = vsel %vm300, %v297, %v299
        %303 = vrot.lane.b32.xlu0 %v264, 92
        %v304 = vpop.permute.xlu0 %303
        %305 = vrot.lane.b32.xlu0 %v237, 92
        %v306 = vpop.permute.xlu0 %305
        %307 = vrot.lane.b32.xlu0 %v265, 92
        %v308 = vpop.permute.xlu0 %307
        %vm309 = vcmask 752640
        %v310 = vsel %vm309, %v304, %v306
        %v311 = vsel %vm309, %v306, %v308
        %312 = vrot.lane.b32.xlu0 %v275, 91
        %v313 = vpop.permute.xlu0 %312
        %314 = vrot.lane.b32.xlu0 %v253, 91
        %v315 = vpop.permute.xlu0 %314
        %316 = vrot.lane.b32.xlu0 %v264, 91
        %v317 = vpop.permute.xlu0 %316
        %vm318 = vcmask 744448
        %v319 = vsel %vm318, %v313, %v315
        %v320 = vsel %vm318, %v315, %v317
        %321 = vrot.lane.b32.xlu0 %v237, 90
        %v322 = vpop.permute.xlu0 %321
        %323 = vrot.lane.b32.xlu0 %v245, 90
        %v324 = vpop.permute.xlu0 %323
        %325 = vrot.lane.b32.xlu0 %v244, 90
        %v326 = vpop.permute.xlu0 %325
        %vm327 = vcmask 736256
        %v328 = vsel %vm327, %v322, %v324
        %v329 = vsel %vm327, %v324, %v326
        %vm330 = vcmask 1041408
        %v333 = vsel %vm330, %v237, %v262
        %v336 = vsel %vm330, %v245, %v263
        %v339 = vsel %vm330, %v244, %v260
        %vm340 = vcmask 1043456
        %v342 = vsel %vm340, %v333, %v273
        %v344 = vsel %vm340, %v336, %v274
        %v346 = vsel %vm340, %v339, %v271
        %vm347 = vcmask 1045504
        %v349 = vsel %vm347, %v342, %v283
        %v352 = vsel %vm347, %v344, %v284
        %v355 = vsel %vm347, %v346, %v281
        %v359 = vsel %vm330, %v292, %v301
        %v362 = vsel %vm330, %v293, %v302
        %v365 = vsel %vm330, %v290, %v299
        %v367 = vsel %vm340, %v359, %v310
        %v369 = vsel %vm340, %v362, %v311
        %v371 = vsel %vm340, %v365, %v308
        %v373 = vsel %vm347, %v367, %v319
        %v376 = vsel %vm347, %v369, %v320
        %v379 = vsel %vm347, %v371, %v317
        %v381 = vld [vmem:[%s1] sm:$0xf]
        %vm382 = vcmask 293888
        %v384 = vsel %vm382, %v381, 0
        %v387 = vsel %vm330, %v328, 0
        %v390 = vsel %vm330, %v329, 0
        %v393 = vsel %vm330, %v326, 0
        %395 = vmatprep.subr.bf16.mxu0 %v352
        %396 = vmatpush1.bf16.msra.mxu0 %v349
        %397 = vmatprep.subr.bf16.mxu0 %v376
        %398 = vmatpush1.bf16.msra.mxu0 %v373
        %399 = vmatprep.subr.bf16.mxu0 %v390
        %400 = vmatpush1.bf16.msra.mxu0 %v387
        %401 = vmatprep.subr.bf16.mxu0 0
        %402 = vmatpush1.bf16.msra.mxu0 0
        %403 = vmatprep.subr.bf16.mxu0 0
        %404 = vmatpush1.bf16.msra.mxu0 0
        %405 = vmatprep.subr.bf16.mxu0 0
        %406 = vmatpush1.bf16.msra.mxu0 0
        %407 = vmatprep.subr.bf16.mxu0 0
        %408 = vmatpush1.bf16.msra.mxu0 0
        %409 = vmatprep.subr.bf16.mxu0 0
        %410 = vmatpush1.bf16.msra.mxu0 0
        %411 = vmatprep.subr.bf16.mxu0 0
        %412 = vmatpush1.bf16.msra.mxu0 0
        %413 = vmatprep.subr.bf16.mxu0 0
        %414 = vmatpush1.bf16.msra.mxu0 0
        %415 = vmatprep.subr.bf16.mxu0 0
        %416 = vmatpush1.bf16.msra.mxu0 0
        %417 = vmatprep.subr.bf16.mxu0 0
        %418 = vmatpush1.bf16.msra.mxu0 0
        %419 = vmatprep.subr.bf16.mxu0 0
        %420 = vmatpush1.bf16.msra.mxu0 0
        %421 = vmatprep.subr.bf16.mxu0 0
        %422 = vmatpush1.bf16.msra.mxu0 0
        %423 = vmatprep.subr.bf16.mxu0 0
        %424 = vmatpush1.bf16.msra.mxu0 0
        %425 = vmatprep.subr.bf16.mxu0 0
        %426 = vmatpush1.bf16.msra.mxu0 0
        %427 = vmatprep.mubr.bf16.mxu0 0
        %428 = vmatmul.mubr.bf16.gmra.mrb[0].mxu0 %v384
        %v429 = vpop.f32.mrb[0].mxu0
        %v430 = vadd.f32 0.0, %v429
        %v431 = vpop.f32.mrb[0].mxu0
        %v432 = vadd.f32 0.0, %v431
        %v433 = vpop.f32.mrb[0].mxu0
        %v434 = vpop.f32.mrb[0].mxu0
        %435 = vdwg.mxu0
        %436 = vmatprep.subr.bf16.mxu0 0
        %437 = vmatpush1.bf16.msra.mxu0 %v355
        %438 = vmatprep.subr.bf16.mxu0 0
        %439 = vmatpush1.bf16.msra.mxu0 %v379
        %440 = vmatprep.subr.bf16.mxu0 0
        %441 = vmatpush1.bf16.msra.mxu0 %v393
        %442 = vmatprep.subr.bf16.mxu0 0
        %443 = vmatpush1.bf16.msra.mxu0 0
        %444 = vmatprep.subr.bf16.mxu0 0
        %445 = vmatpush1.bf16.msra.mxu0 0
        %446 = vmatprep.subr.bf16.mxu0 0
        %447 = vmatpush1.bf16.msra.mxu0 0
        %448 = vmatprep.subr.bf16.mxu0 0
        %449 = vmatpush1.bf16.msra.mxu0 0
        %450 = vmatprep.subr.bf16.mxu0 0
        %451 = vmatpush1.bf16.msra.mxu0 0
        %452 = vmatprep.subr.bf16.mxu0 0
        %453 = vmatpush1.bf16.msra.mxu0 0
        %454 = vmatprep.subr.bf16.mxu0 0
        %455 = vmatpush1.bf16.msra.mxu0 0
        %456 = vmatprep.subr.bf16.mxu0 0
        %457 = vmatpush1.bf16.msra.mxu0 0
        %458 = vmatprep.subr.bf16.mxu0 0
        %459 = vmatpush1.bf16.msra.mxu0 0
        %460 = vmatprep.subr.bf16.mxu0 0
        %461 = vmatpush1.bf16.msra.mxu0 0
        %462 = vmatprep.subr.bf16.mxu0 0
        %463 = vmatpush1.bf16.msra.mxu0 0
        %464 = vmatprep.subr.bf16.mxu0 0
        %465 = vmatpush1.bf16.msra.mxu0 0
        %466 = vmatprep.subr.bf16.mxu0 0
        %467 = vmatpush1.bf16.msra.mxu0 0
        %468 = vmatprep.mubr.bf16.mxu0 0
        %469 = vmatmul.mubr.bf16.gmra.mrb[0].mxu0 %v384
        %v470 = vpop.f32.mrb[0].mxu0
        %v471 = vadd.f32 0.0, %v470
        %v472 = vpop.f32.mrb[0].mxu0
        %v473 = vpop.f32.mrb[0].mxu0
        %v474 = vpop.f32.mrb[0].mxu0
        %475 = vdwg.mxu0
        %vm476 = vcmp.gt.f32.partialorder %v430, 0.0
        %vm477 = vcmp.gt.f32.partialorder %v432, 0.0
        %vm478 = vcmp.gt.f32.partialorder %v471, 0.0
        %v479 = vmul.f32 %v430, 0.1
        %v480 = vmul.f32 %v432, 0.1
        %v481 = vmul.f32 %v471, 0.1
        %v482 = vsel %vm476, %v430, %v479
        %v483 = vsel %vm477, %v432, %v480
        %v484 = vsel %vm478, %v471, %v481
        %v485 = vld [vmem:[%s3] sm:$0x7]
        %v486 = vunpack.c.l.bf16 %v485
        %v488 = vlaneseq
        %v489 = vshrl.u32 %v488, 7
        %v490 = vsub.s32 0, %v489
        %v491 = vrot.slane %v486, %v490
        %v492 = vlaneseq
        %v493 = vshrl.u32 %v492, 7
        %v494 = vsub.s32 2, %v493
        %v495 = vrot.slane %v486, %v494
        %v496 = vlaneseq
        %v497 = vshrl.u32 %v496, 7
        %v498 = vsub.s32 4, %v497
        %v499 = vrot.slane %v486, %v498
        %v503 = vlaneseq
        %v504 = vshrl.u32 %v503, 7
        %v505 = vsub.s32 0, %v504
        %v506 = vrot.slane %v491, %v505
        %v507 = vlaneseq
        %v508 = vshrl.u32 %v507, 7
        %v509 = vsub.s32 0, %v508
        %v510 = vrot.slane %v495, %v509
        %v511 = vlaneseq
        %v512 = vshrl.u32 %v511, 7
        %v513 = vsub.s32 0, %v512
        %v514 = vrot.slane %v499, %v513
        %v515 = vmul.f32 %v482, %v506
        %v516 = vmul.f32 %v483, %v510
        %v517 = vmul.f32 %v484, %v514
        %v518 = vpack.c.bf16 %v515, %v515
        %v519 = vpack.c.bf16 %v516, %v516
        %v520 = vpack.c.bf16 %v517, %v517
        %v524 = vunpack.c.l.b16 %v518
        %v525 = vunpack.c.l.b16 %v519
        %v526 = vunpack.c.l.b16 %v520
        %v527 = vpack.c.b16 %v525, %v524
        %v528 = vpack.c.b16 %v526, %v526
        %529 = vrot.lane.b32.xlu0 %v527, 19
        %v530 = vpop.permute.xlu0 %529
        %531 = vrot.lane.b32.xlu0 %v528, 19
        %v532 = vpop.permute.xlu0 %531
        %v533 = vrot.slane %v530, 4
        %vm534 = vcmask 154624
        %v535 = vsel %vm534, %v533, %v530
        %v536 = vsel %vm534, %v533, %v532
        %vm539 = vcmask 1043608
        %vm540 = vcmask 1047556
        %vm541 = vmor %vm540, %vm539
        %542 = vst.msk [vmem:[#allocation2] sm:$0xff] %vm541, %v535
        %vm543 = vcmask 396288
        %544 = vst.msk [vmem:[#allocation2 + $0x8] sm:$0xf] %vm543, %v536
        %v545 = vld [vmem:[#allocation2] sm:$0xff]
        %v546 = vld [vmem:[#allocation2 + $0x8] sm:$0xf]
        %v549 = vunpack.c.l.b16 %v545
        %v550 = vunpack.c.h.b16 %v545
        %v551 = vunpack.c.l.b16 %v546
        %v552 = vpack.c.b16 %v549, %v549
        %v553 = vpack.c.b16 %v550, %v550
        %v554 = vpack.c.b16 %v551, %v551
        %555 = vrot.lane.b32.xlu0 %v552, 127
        %v556 = vpop.permute.xlu0 %555
        %557 = vrot.lane.b32.xlu0 %v553, 127
        %v558 = vpop.permute.xlu0 %557
        %559 = vrot.lane.b32.xlu0 %v554, 127
        %v560 = vpop.permute.xlu0 %559
        %v561 = vsel %vm261, %v556, %v558
        %v562 = vsel %vm261, %v558, %v560
        %563 = vrot.lane.b32.xlu0 %v552, 126
        %v564 = vpop.permute.xlu0 %563
        %565 = vrot.lane.b32.xlu0 %v553, 126
        %v566 = vpop.permute.xlu0 %565
        %567 = vrot.lane.b32.xlu0 %v554, 126
        %v568 = vpop.permute.xlu0 %567
        %v569 = vsel %vm272, %v564, %v566
        %v570 = vsel %vm272, %v566, %v568
        %571 = vrot.lane.b32.xlu0 %v552, 110
        %v572 = vpop.permute.xlu0 %571
        %573 = vrot.lane.b32.xlu0 %v553, 110
        %v574 = vpop.permute.xlu0 %573
        %575 = vrot.lane.b32.xlu0 %v554, 110
        %v576 = vpop.permute.xlu0 %575
        %v577 = vsel %vm282, %v572, %v574
        %v578 = vsel %vm282, %v574, %v576
        %579 = vrot.lane.b32.xlu0 %v552, 109
        %v580 = vpop.permute.xlu0 %579
        %581 = vrot.lane.b32.xlu0 %v553, 109
        %v582 = vpop.permute.xlu0 %581
        %583 = vrot.lane.b32.xlu0 %v554, 109
        %v584 = vpop.permute.xlu0 %583
        %v585 = vsel %vm291, %v580, %v582
        %v586 = vsel %vm291, %v582, %v584
        %587 = vrot.lane.b32.xlu0 %v552, 108
        %v588 = vpop.permute.xlu0 %587
        %589 = vrot.lane.b32.xlu0 %v553, 108
        %v590 = vpop.permute.xlu0 %589
        %591 = vrot.lane.b32.xlu0 %v554, 108
        %v592 = vpop.permute.xlu0 %591
        %v593 = vsel %vm300, %v588, %v590
        %v594 = vsel %vm300, %v590, %v592
        %595 = vrot.lane.b32.xlu0 %v552, 92
        %v596 = vpop.permute.xlu0 %595
        %597 = vrot.lane.b32.xlu0 %v553, 92
        %v598 = vpop.permute.xlu0 %597
        %599 = vrot.lane.b32.xlu0 %v554, 92
        %v600 = vpop.permute.xlu0 %599
        %v601 = vsel %vm309, %v596, %v598
        %v602 = vsel %vm309, %v598, %v600
        %603 = vrot.lane.b32.xlu0 %v552, 91
        %v604 = vpop.permute.xlu0 %603
        %605 = vrot.lane.b32.xlu0 %v553, 91
        %v606 = vpop.permute.xlu0 %605
        %607 = vrot.lane.b32.xlu0 %v554, 91
        %v608 = vpop.permute.xlu0 %607
        %v609 = vsel %vm318, %v604, %v606
        %v610 = vsel %vm318, %v606, %v608
        %611 = vrot.lane.b32.xlu0 %v552, 90
        %v612 = vpop.permute.xlu0 %611
        %613 = vrot.lane.b32.xlu0 %v553, 90
        %v614 = vpop.permute.xlu0 %613
        %615 = vrot.lane.b32.xlu0 %v554, 90
        %v616 = vpop.permute.xlu0 %615
        %v617 = vsel %vm327, %v612, %v614
        %v618 = vsel %vm327, %v614, %v616
        %v621 = vsel %vm340, %v552, %v561
        %v625 = vsel %vm340, %v553, %v562
        %v629 = vsel %vm340, %v554, %v560
        %v633 = vsel %vm340, %v569, %v577
        %v637 = vsel %vm340, %v570, %v578
        %v641 = vsel %vm340, %v568, %v576
        %v645 = vsel %vm340, %v585, %v593
        %v649 = vsel %vm340, %v586, %v594
        %v653 = vsel %vm340, %v584, %v592
        %v657 = vsel %vm340, %v601, %v609
        %v661 = vsel %vm340, %v602, %v610
        %v665 = vsel %vm340, %v600, %v608
        %v667 = vld [vmem:[%s2] sm:$0xf]
        %vm668 = vcmask 588800
        %v670 = vsel %vm668, %v667, 0
        %v673 = vsel %vm340, %v617, 0
        %v676 = vsel %vm340, %v618, 0
        %v679 = vsel %vm340, %v616, 0
        %681 = vmatprep.subr.bf16.mxu0 %v625
        %682 = vmatpush1.bf16.msra.mxu0 %v621
        %683 = vmatprep.subr.bf16.mxu0 %v637
        %684 = vmatpush1.bf16.msra.mxu0 %v633
        %685 = vmatprep.subr.bf16.mxu0 %v649
        %686 = vmatpush1.bf16.msra.mxu0 %v645
        %687 = vmatprep.subr.bf16.mxu0 %v661
        %688 = vmatpush1.bf16.msra.mxu0 %v657
        %689 = vmatprep.subr.bf16.mxu0 %v676
        %690 = vmatpush1.bf16.msra.mxu0 %v673
        %691 = vmatprep.subr.bf16.mxu0 0
        %692 = vmatpush1.bf16.msra.mxu0 0
        %693 = vmatprep.subr.bf16.mxu0 0
        %694 = vmatpush1.bf16.msra.mxu0 0
        %695 = vmatprep.subr.bf16.mxu0 0
        %696 = vmatpush1.bf16.msra.mxu0 0
        %697 = vmatprep.subr.bf16.mxu0 0
        %698 = vmatpush1.bf16.msra.mxu0 0
        %699 = vmatprep.subr.bf16.mxu0 0
        %700 = vmatpush1.bf16.msra.mxu0 0
        %701 = vmatprep.subr.bf16.mxu0 0
        %702 = vmatpush1.bf16.msra.mxu0 0
        %703 = vmatprep.subr.bf16.mxu0 0
        %704 = vmatpush1.bf16.msra.mxu0 0
        %705 = vmatprep.subr.bf16.mxu0 0
        %706 = vmatpush1.bf16.msra.mxu0 0
        %707 = vmatprep.subr.bf16.mxu0 0
        %708 = vmatpush1.bf16.msra.mxu0 0
        %709 = vmatprep.subr.bf16.mxu0 0
        %710 = vmatpush1.bf16.msra.mxu0 0
        %711 = vmatprep.subr.bf16.mxu0 0
        %712 = vmatpush1.bf16.msra.mxu0 0
        %713 = vmatprep.mubr.bf16.mxu0 0
        %714 = vmatmul.mubr.bf16.gmra.mrb[0].mxu0 %v670
        %v715 = vpop.f32.mrb[0].mxu0
        %v716 = vadd.f32 0.0, %v715
        %v717 = vpop.f32.mrb[0].mxu0
        %v718 = vadd.f32 0.0, %v717
        %v719 = vpop.f32.mrb[0].mxu0
        %v720 = vpop.f32.mrb[0].mxu0
        %721 = vdwg.mxu0
        %722 = vmatprep.subr.bf16.mxu0 0
        %723 = vmatpush1.bf16.msra.mxu0 %v629
        %724 = vmatprep.subr.bf16.mxu0 0
        %725 = vmatpush1.bf16.msra.mxu0 %v641
        %726 = vmatprep.subr.bf16.mxu0 0
        %727 = vmatpush1.bf16.msra.mxu0 %v653
        %728 = vmatprep.subr.bf16.mxu0 0
        %729 = vmatpush1.bf16.msra.mxu0 %v665
        %730 = vmatprep.subr.bf16.mxu0 0
        %731 = vmatpush1.bf16.msra.mxu0 %v679
        %732 = vmatprep.subr.bf16.mxu0 0
        %733 = vmatpush1.bf16.msra.mxu0 0
        %734 = vmatprep.subr.bf16.mxu0 0
        %735 = vmatpush1.bf16.msra.mxu0 0
        %736 = vmatprep.subr.bf16.mxu0 0
        %737 = vmatpush1.bf16.msra.mxu0 0
        %738 = vmatprep.subr.bf16.mxu0 0
        %739 = vmatpush1.bf16.msra.mxu0 0
        %740 = vmatprep.subr.bf16.mxu0 0
        %741 = vmatpush1.bf16.msra.mxu0 0
        %742 = vmatprep.subr.bf16.mxu0 0
        %743 = vmatpush1.bf16.msra.mxu0 0
        %744 = vmatprep.subr.bf16.mxu0 0
        %745 = vmatpush1.bf16.msra.mxu0 0
        %746 = vmatprep.subr.bf16.mxu0 0
        %747 = vmatpush1.bf16.msra.mxu0 0
        %748 = vmatprep.subr.bf16.mxu0 0
        %749 = vmatpush1.bf16.msra.mxu0 0
        %750 = vmatprep.subr.bf16.mxu0 0
        %751 = vmatpush1.bf16.msra.mxu0 0
        %752 = vmatprep.subr.bf16.mxu0 0
        %753 = vmatpush1.bf16.msra.mxu0 0
        %754 = vmatprep.mubr.bf16.mxu0 0
        %755 = vmatmul.mubr.bf16.gmra.mrb[0].mxu0 %v670
        %v756 = vpop.f32.mrb[0].mxu0
        %v757 = vadd.f32 0.0, %v756
        %v758 = vpop.f32.mrb[0].mxu0
        %v759 = vpop.f32.mrb[0].mxu0
        %v760 = vpop.f32.mrb[0].mxu0
        %761 = vdwg.mxu0
        %vm762 = vcmp.gt.f32.partialorder %v716, 0.0
        %vm763 = vcmp.gt.f32.partialorder %v718, 0.0
        %vm764 = vcmp.gt.f32.partialorder %v757, 0.0
        %v765 = vmul.f32 %v716, 0.1
        %v766 = vmul.f32 %v718, 0.1
        %v767 = vmul.f32 %v757, 0.1
        %v768 = vsel %vm762, %v716, %v765
        %v769 = vsel %vm763, %v718, %v766
        %v770 = vsel %vm764, %v757, %v767
        %v771 = vld [vmem:[%s4] sm:$0xff]
        %v772 = vld [vmem:[%s4 + $0x8] sm:$0xff]
        %vm773 = vcmask 130048
        %v775 = vsel %vm773, %v768, 0
        %777 = vmatprep.subr.mxu0 0.0
        %778 = vmatpush1.msra.mxu0 %v771
        %779 = vmatprep.subr.mxu0 0.0
        %780 = vmatpush1.msra.mxu0 %v772
        %781 = vmatprep.subr.mxu0 0.0
        %782 = vmatpush1.msra.mxu0 0.0
        %783 = vmatprep.subr.mxu0 0.0
        %784 = vmatpush1.msra.mxu0 0.0
        %785 = vmatprep.subr.mxu0 0.0
        %786 = vmatpush1.msra.mxu0 0.0
        %787 = vmatprep.subr.mxu0 0.0
        %788 = vmatpush1.msra.mxu0 0.0
        %789 = vmatprep.subr.mxu0 0.0
        %790 = vmatpush1.msra.mxu0 0.0
        %791 = vmatprep.subr.mxu0 0.0
        %792 = vmatpush1.msra.mxu0 0.0
        %793 = vmatprep.subr.mxu0 0.0
        %794 = vmatpush1.msra.mxu0 0.0
        %795 = vmatprep.subr.mxu0 0.0
        %796 = vmatpush1.msra.mxu0 0.0
        %797 = vmatprep.subr.mxu0 0.0
        %798 = vmatpush1.msra.mxu0 0.0
        %799 = vmatprep.subr.mxu0 0.0
        %800 = vmatpush1.msra.mxu0 0.0
        %801 = vmatprep.subr.mxu0 0.0
        %802 = vmatpush1.msra.mxu0 0.0
        %803 = vmatprep.subr.mxu0 0.0
        %804 = vmatpush1.msra.mxu0 0.0
        %805 = vmatprep.subr.mxu0 0.0
        %806 = vmatpush1.msra.mxu0 0.0
        %807 = vmatprep.subr.mxu0 0.0
        %808 = vmatpush1.msra.mxu0 0.0
        %809 = vmatprep.subr.mxu0 0.0
        %810 = vmatpush1.msra.mxu0 0.0
        %811 = vmatprep.subr.mxu0 0.0
        %812 = vmatpush1.msra.mxu0 0.0
        %813 = vmatprep.subr.mxu0 0.0
        %814 = vmatpush1.msra.mxu0 0.0
        %815 = vmatprep.subr.mxu0 0.0
        %816 = vmatpush1.msra.mxu0 0.0
        %817 = vmatprep.subr.mxu0 0.0
        %818 = vmatpush1.msra.mxu0 0.0
        %819 = vmatprep.subr.mxu0 0.0
        %820 = vmatpush1.msra.mxu0 0.0
        %821 = vmatprep.subr.mxu0 0.0
        %822 = vmatpush1.msra.mxu0 0.0
        %823 = vmatprep.subr.mxu0 0.0
        %824 = vmatpush1.msra.mxu0 0.0
        %825 = vmatprep.subr.mxu0 0.0
        %826 = vmatpush1.msra.mxu0 0.0
        %827 = vmatprep.subr.mxu0 0.0
        %828 = vmatpush1.msra.mxu0 0.0
        %829 = vmatprep.subr.mxu0 0.0
        %830 = vmatpush1.msra.mxu0 0.0
        %831 = vmatprep.subr.mxu0 0.0
        %832 = vmatpush1.msra.mxu0 0.0
        %833 = vmatprep.subr.mxu0 0.0
        %834 = vmatpush1.msra.mxu0 0.0
        %835 = vmatprep.subr.mxu0 0.0
        %836 = vmatpush1.msra.mxu0 0.0
        %837 = vmatprep.subr.mxu0 0.0
        %838 = vmatpush1.msra.mxu0 0.0
        %839 = vmatprep.subr.mxu0 0.0
        %840 = vmatpush1.msra.mxu0 0.0
        %841 = vmatprep.mubr.f32.mxu0 0.0
        %842 = vmatmul.mubr.f32.gmra.mrb[0].mxu0 %v775
        %v843 = vpop.f32.mrb[0].mxu0
        %v844 = vadd.f32 0.0, %v843
        %v845 = vpop.f32.mrb[0].mxu0
        %846 = vdwg.mxu0
        %847 = vrot.lane.b32.xlu0 %v768, 92
        %v848 = vpop.permute.xlu0 %847
        %v849 = vsel %vm773, %v848, 0
        %851 = vmatprep.subr.mxu0 0.0
        %852 = vmatpush1.msra.mxu0 %v771
        %853 = vmatprep.subr.mxu0 0.0
        %854 = vmatpush1.msra.mxu0 %v772
        %855 = vmatprep.subr.mxu0 0.0
        %856 = vmatpush1.msra.mxu0 0.0
        %857 = vmatprep.subr.mxu0 0.0
        %858 = vmatpush1.msra.mxu0 0.0
        %859 = vmatprep.subr.mxu0 0.0
        %860 = vmatpush1.msra.mxu0 0.0
        %861 = vmatprep.subr.mxu0 0.0
        %862 = vmatpush1.msra.mxu0 0.0
        %863 = vmatprep.subr.mxu0 0.0
        %864 = vmatpush1.msra.mxu0 0.0
        %865 = vmatprep.subr.mxu0 0.0
        %866 = vmatpush1.msra.mxu0 0.0
        %867 = vmatprep.subr.mxu0 0.0
        %868 = vmatpush1.msra.mxu0 0.0
        %869 = vmatprep.subr.mxu0 0.0
        %870 = vmatpush1.msra.mxu0 0.0
        %871 = vmatprep.subr.mxu0 0.0
        %872 = vmatpush1.msra.mxu0 0.0
        %873 = vmatprep.subr.mxu0 0.0
        %874 = vmatpush1.msra.mxu0 0.0
        %875 = vmatprep.subr.mxu0 0.0
        %876 = vmatpush1.msra.mxu0 0.0
        %877 = vmatprep.subr.mxu0 0.0
        %878 = vmatpush1.msra.mxu0 0.0
        %879 = vmatprep.subr.mxu0 0.0
        %880 = vmatpush1.msra.mxu0 0.0
        %881 = vmatprep.subr.mxu0 0.0
        %882 = vmatpush1.msra.mxu0 0.0
        %883 = vmatprep.subr.mxu0 0.0
        %884 = vmatpush1.msra.mxu0 0.0
        %885 = vmatprep.subr.mxu0 0.0
        %886 = vmatpush1.msra.mxu0 0.0
        %887 = vmatprep.subr.mxu0 0.0
        %888 = vmatpush1.msra.mxu0 0.0
        %889 = vmatprep.subr.mxu0 0.0
        %890 = vmatpush1.msra.mxu0 0.0
        %891 = vmatprep.subr.mxu0 0.0
        %892 = vmatpush1.msra.mxu0 0.0
        %893 = vmatprep.subr.mxu0 0.0
        %894 = vmatpush1.msra.mxu0 0.0
        %895 = vmatprep.subr.mxu0 0.0
        %896 = vmatpush1.msra.mxu0 0.0
        %897 = vmatprep.subr.mxu0 0.0
        %898 = vmatpush1.msra.mxu0 0.0
        %899 = vmatprep.subr.mxu0 0.0
        %900 = vmatpush1.msra.mxu0 0.0
        %901 = vmatprep.subr.mxu0 0.0
        %902 = vmatpush1.msra.mxu0 0.0
        %903 = vmatprep.subr.mxu0 0.0
        %904 = vmatpush1.msra.mxu0 0.0
        %905 = vmatprep.subr.mxu0 0.0
        %906 = vmatpush1.msra.mxu0 0.0
        %907 = vmatprep.subr.mxu0 0.0
        %908 = vmatpush1.msra.mxu0 0.0
        %909 = vmatprep.subr.mxu0 0.0
        %910 = vmatpush1.msra.mxu0 0.0
        %911 = vmatprep.subr.mxu0 0.0
        %912 = vmatpush1.msra.mxu0 0.0
        %913 = vmatprep.subr.mxu0 0.0
        %914 = vmatpush1.msra.mxu0 0.0
        %915 = vmatprep.mubr.f32.mxu0 0.0
        %916 = vmatmul.mubr.f32.gmra.mrb[0].mxu0 %v849
        %v917 = vpop.f32.mrb[0].mxu0
        %v918 = vadd.f32 0.0, %v917
        %v919 = vpop.f32.mrb[0].mxu0
        %920 = vdwg.mxu0
        %921 = vrot.lane.b32.xlu0 %v768, 56
        %v922 = vpop.permute.xlu0 %921
        %v923 = vsel %vm773, %v922, 0
        %925 = vmatprep.subr.mxu0 0.0
        %926 = vmatpush1.msra.mxu0 %v771
        %927 = vmatprep.subr.mxu0 0.0
        %928 = vmatpush1.msra.mxu0 %v772
        %929 = vmatprep.subr.mxu0 0.0
        %930 = vmatpush1.msra.mxu0 0.0
        %931 = vmatprep.subr.mxu0 0.0
        %932 = vmatpush1.msra.mxu0 0.0
        %933 = vmatprep.subr.mxu0 0.0
        %934 = vmatpush1.msra.mxu0 0.0
        %935 = vmatprep.subr.mxu0 0.0
        %936 = vmatpush1.msra.mxu0 0.0
        %937 = vmatprep.subr.mxu0 0.0
        %938 = vmatpush1.msra.mxu0 0.0
        %939 = vmatprep.subr.mxu0 0.0
        %940 = vmatpush1.msra.mxu0 0.0
        %941 = vmatprep.subr.mxu0 0.0
        %942 = vmatpush1.msra.mxu0 0.0
        %943 = vmatprep.subr.mxu0 0.0
        %944 = vmatpush1.msra.mxu0 0.0
        %945 = vmatprep.subr.mxu0 0.0
        %946 = vmatpush1.msra.mxu0 0.0
        %947 = vmatprep.subr.mxu0 0.0
        %948 = vmatpush1.msra.mxu0 0.0
        %949 = vmatprep.subr.mxu0 0.0
        %950 = vmatpush1.msra.mxu0 0.0
        %951 = vmatprep.subr.mxu0 0.0
        %952 = vmatpush1.msra.mxu0 0.0
        %953 = vmatprep.subr.mxu0 0.0
        %954 = vmatpush1.msra.mxu0 0.0
        %955 = vmatprep.subr.mxu0 0.0
        %956 = vmatpush1.msra.mxu0 0.0
        %957 = vmatprep.subr.mxu0 0.0
        %958 = vmatpush1.msra.mxu0 0.0
        %959 = vmatprep.subr.mxu0 0.0
        %960 = vmatpush1.msra.mxu0 0.0
        %961 = vmatprep.subr.mxu0 0.0
        %962 = vmatpush1.msra.mxu0 0.0
        %963 = vmatprep.subr.mxu0 0.0
        %964 = vmatpush1.msra.mxu0 0.0
        %965 = vmatprep.subr.mxu0 0.0
        %966 = vmatpush1.msra.mxu0 0.0
        %967 = vmatprep.subr.mxu0 0.0
        %968 = vmatpush1.msra.mxu0 0.0
        %969 = vmatprep.subr.mxu0 0.0
        %970 = vmatpush1.msra.mxu0 0.0
        %971 = vmatprep.subr.mxu0 0.0
        %972 = vmatpush1.msra.mxu0 0.0
        %973 = vmatprep.subr.mxu0 0.0
        %974 = vmatpush1.msra.mxu0 0.0
        %975 = vmatprep.subr.mxu0 0.0
        %976 = vmatpush1.msra.mxu0 0.0
        %977 = vmatprep.subr.mxu0 0.0
        %978 = vmatpush1.msra.mxu0 0.0
        %979 = vmatprep.subr.mxu0 0.0
        %980 = vmatpush1.msra.mxu0 0.0
        %981 = vmatprep.subr.mxu0 0.0
        %982 = vmatpush1.msra.mxu0 0.0
        %983 = vmatprep.subr.mxu0 0.0
        %984 = vmatpush1.msra.mxu0 0.0
        %985 = vmatprep.subr.mxu0 0.0
        %986 = vmatpush1.msra.mxu0 0.0
        %987 = vmatprep.subr.mxu0 0.0
        %988 = vmatpush1.msra.mxu0 0.0
        %989 = vmatprep.mubr.f32.mxu0 0.0
        %990 = vmatmul.mubr.f32.gmra.mrb[0].mxu0 %v923
        %v991 = vpop.f32.mrb[0].mxu0
        %v992 = vadd.f32 0.0, %v991
        %v993 = vpop.f32.mrb[0].mxu0
        %994 = vdwg.mxu0
        %995 = vrot.lane.b32.xlu0 %v768, 20
        %v996 = vpop.permute.xlu0 %995
        %v997 = vsel %vm773, %v996, 0
        %999 = vmatprep.subr.mxu0 0.0
        %1000 = vmatpush1.msra.mxu0 %v771
        %1001 = vmatprep.subr.mxu0 0.0
        %1002 = vmatpush1.msra.mxu0 %v772
        %1003 = vmatprep.subr.mxu0 0.0
        %1004 = vmatpush1.msra.mxu0 0.0
        %1005 = vmatprep.subr.mxu0 0.0
        %1006 = vmatpush1.msra.mxu0 0.0
        %1007 = vmatprep.subr.mxu0 0.0
        %1008 = vmatpush1.msra.mxu0 0.0
        %1009 = vmatprep.subr.mxu0 0.0
        %1010 = vmatpush1.msra.mxu0 0.0
        %1011 = vmatprep.subr.mxu0 0.0
        %1012 = vmatpush1.msra.mxu0 0.0
        %1013 = vmatprep.subr.mxu0 0.0
        %1014 = vmatpush1.msra.mxu0 0.0
        %1015 = vmatprep.subr.mxu0 0.0
        %1016 = vmatpush1.msra.mxu0 0.0
        %1017 = vmatprep.subr.mxu0 0.0
        %1018 = vmatpush1.msra.mxu0 0.0
        %1019 = vmatprep.subr.mxu0 0.0
        %1020 = vmatpush1.msra.mxu0 0.0
        %1021 = vmatprep.subr.mxu0 0.0
        %1022 = vmatpush1.msra.mxu0 0.0
        %1023 = vmatprep.subr.mxu0 0.0
        %1024 = vmatpush1.msra.mxu0 0.0
        %1025 = vmatprep.subr.mxu0 0.0
        %1026 = vmatpush1.msra.mxu0 0.0
        %1027 = vmatprep.subr.mxu0 0.0
        %1028 = vmatpush1.msra.mxu0 0.0
        %1029 = vmatprep.subr.mxu0 0.0
        %1030 = vmatpush1.msra.mxu0 0.0
        %1031 = vmatprep.subr.mxu0 0.0
        %1032 = vmatpush1.msra.mxu0 0.0
        %1033 = vmatprep.subr.mxu0 0.0
        %1034 = vmatpush1.msra.mxu0 0.0
        %1035 = vmatprep.subr.mxu0 0.0
        %1036 = vmatpush1.msra.mxu0 0.0
        %1037 = vmatprep.subr.mxu0 0.0
        %1038 = vmatpush1.msra.mxu0 0.0
        %1039 = vmatprep.subr.mxu0 0.0
        %1040 = vmatpush1.msra.mxu0 0.0
        %1041 = vmatprep.subr.mxu0 0.0
        %1042 = vmatpush1.msra.mxu0 0.0
        %1043 = vmatprep.subr.mxu0 0.0
        %1044 = vmatpush1.msra.mxu0 0.0
        %1045 = vmatprep.subr.mxu0 0.0
        %1046 = vmatpush1.msra.mxu0 0.0
        %1047 = vmatprep.subr.mxu0 0.0
        %1048 = vmatpush1.msra.mxu0 0.0
        %1049 = vmatprep.subr.mxu0 0.0
        %1050 = vmatpush1.msra.mxu0 0.0
        %1051 = vmatprep.subr.mxu0 0.0
        %1052 = vmatpush1.msra.mxu0 0.0
        %1053 = vmatprep.subr.mxu0 0.0
        %1054 = vmatpush1.msra.mxu0 0.0
        %1055 = vmatprep.subr.mxu0 0.0
        %1056 = vmatpush1.msra.mxu0 0.0
        %1057 = vmatprep.subr.mxu0 0.0
        %1058 = vmatpush1.msra.mxu0 0.0
        %1059 = vmatprep.subr.mxu0 0.0
        %1060 = vmatpush1.msra.mxu0 0.0
        %1061 = vmatprep.subr.mxu0 0.0
        %1062 = vmatpush1.msra.mxu0 0.0
        %1063 = vmatprep.mubr.f32.mxu0 0.0
        %1064 = vmatmul.mubr.f32.gmra.mrb[0].mxu0 %v997
        %v1065 = vpop.f32.mrb[0].mxu0
        %v1066 = vadd.f32 0.0, %v1065
        %v1067 = vpop.f32.mrb[0].mxu0
        %1068 = vdwg.mxu0
        %1070 = vrot.lane.b32.xlu0 %v769, 112
        %v1071 = vpop.permute.xlu0 %1070
        %v1072 = vsel %vm773, %v1071, 0
        %1074 = vmatprep.subr.mxu0 0.0
        %1075 = vmatpush1.msra.mxu0 %v771
        %1076 = vmatprep.subr.mxu0 0.0
        %1077 = vmatpush1.msra.mxu0 %v772
        %1078 = vmatprep.subr.mxu0 0.0
        %1079 = vmatpush1.msra.mxu0 0.0
        %1080 = vmatprep.subr.mxu0 0.0
        %1081 = vmatpush1.msra.mxu0 0.0
        %1082 = vmatprep.subr.mxu0 0.0
        %1083 = vmatpush1.msra.mxu0 0.0
        %1084 = vmatprep.subr.mxu0 0.0
        %1085 = vmatpush1.msra.mxu0 0.0
        %1086 = vmatprep.subr.mxu0 0.0
        %1087 = vmatpush1.msra.mxu0 0.0
        %1088 = vmatprep.subr.mxu0 0.0
        %1089 = vmatpush1.msra.mxu0 0.0
        %1090 = vmatprep.subr.mxu0 0.0
        %1091 = vmatpush1.msra.mxu0 0.0
        %1092 = vmatprep.subr.mxu0 0.0
        %1093 = vmatpush1.msra.mxu0 0.0
        %1094 = vmatprep.subr.mxu0 0.0
        %1095 = vmatpush1.msra.mxu0 0.0
        %1096 = vmatprep.subr.mxu0 0.0
        %1097 = vmatpush1.msra.mxu0 0.0
        %1098 = vmatprep.subr.mxu0 0.0
        %1099 = vmatpush1.msra.mxu0 0.0
        %1100 = vmatprep.subr.mxu0 0.0
        %1101 = vmatpush1.msra.mxu0 0.0
        %1102 = vmatprep.subr.mxu0 0.0
        %1103 = vmatpush1.msra.mxu0 0.0
        %1104 = vmatprep.subr.mxu0 0.0
        %1105 = vmatpush1.msra.mxu0 0.0
        %1106 = vmatprep.subr.mxu0 0.0
        %1107 = vmatpush1.msra.mxu0 0.0
        %1108 = vmatprep.subr.mxu0 0.0
        %1109 = vmatpush1.msra.mxu0 0.0
        %1110 = vmatprep.subr.mxu0 0.0
        %1111 = vmatpush1.msra.mxu0 0.0
        %1112 = vmatprep.subr.mxu0 0.0
        %1113 = vmatpush1.msra.mxu0 0.0
        %1114 = vmatprep.subr.mxu0 0.0
        %1115 = vmatpush1.msra.mxu0 0.0
        %1116 = vmatprep.subr.mxu0 0.0
        %1117 = vmatpush1.msra.mxu0 0.0
        %1118 = vmatprep.subr.mxu0 0.0
        %1119 = vmatpush1.msra.mxu0 0.0
        %1120 = vmatprep.subr.mxu0 0.0
        %1121 = vmatpush1.msra.mxu0 0.0
        %1122 = vmatprep.subr.mxu0 0.0
        %1123 = vmatpush1.msra.mxu0 0.0
        %1124 = vmatprep.subr.mxu0 0.0
        %1125 = vmatpush1.msra.mxu0 0.0
        %1126 = vmatprep.subr.mxu0 0.0
        %1127 = vmatpush1.msra.mxu0 0.0
        %1128 = vmatprep.subr.mxu0 0.0
        %1129 = vmatpush1.msra.mxu0 0.0
        %1130 = vmatprep.subr.mxu0 0.0
        %1131 = vmatpush1.msra.mxu0 0.0
        %1132 = vmatprep.subr.mxu0 0.0
        %1133 = vmatpush1.msra.mxu0 0.0
        %1134 = vmatprep.subr.mxu0 0.0
        %1135 = vmatpush1.msra.mxu0 0.0
        %1136 = vmatprep.subr.mxu0 0.0
        %1137 = vmatpush1.msra.mxu0 0.0
        %1138 = vmatprep.mubr.f32.mxu0 0.0
        %1139 = vmatmul.mubr.f32.gmra.mrb[0].mxu0 %v1072
        %v1140 = vpop.f32.mrb[0].mxu0
        %v1141 = vadd.f32 0.0, %v1140
        %v1142 = vpop.f32.mrb[0].mxu0
        %1143 = vdwg.mxu0
        %1144 = vrot.lane.b32.xlu0 %v769, 76
        %v1145 = vpop.permute.xlu0 %1144
        %v1146 = vsel %vm773, %v1145, 0
        %1148 = vmatprep.subr.mxu0 0.0
        %1149 = vmatpush1.msra.mxu0 %v771
        %1150 = vmatprep.subr.mxu0 0.0
        %1151 = vmatpush1.msra.mxu0 %v772
        %1152 = vmatprep.subr.mxu0 0.0
        %1153 = vmatpush1.msra.mxu0 0.0
        %1154 = vmatprep.subr.mxu0 0.0
        %1155 = vmatpush1.msra.mxu0 0.0
        %1156 = vmatprep.subr.mxu0 0.0
        %1157 = vmatpush1.msra.mxu0 0.0
        %1158 = vmatprep.subr.mxu0 0.0
        %1159 = vmatpush1.msra.mxu0 0.0
        %1160 = vmatprep.subr.mxu0 0.0
        %1161 = vmatpush1.msra.mxu0 0.0
        %1162 = vmatprep.subr.mxu0 0.0
        %1163 = vmatpush1.msra.mxu0 0.0
        %1164 = vmatprep.subr.mxu0 0.0
        %1165 = vmatpush1.msra.mxu0 0.0
        %1166 = vmatprep.subr.mxu0 0.0
        %1167 = vmatpush1.msra.mxu0 0.0
        %1168 = vmatprep.subr.mxu0 0.0
        %1169 = vmatpush1.msra.mxu0 0.0
        %1170 = vmatprep.subr.mxu0 0.0
        %1171 = vmatpush1.msra.mxu0 0.0
        %1172 = vmatprep.subr.mxu0 0.0
        %1173 = vmatpush1.msra.mxu0 0.0
        %1174 = vmatprep.subr.mxu0 0.0
        %1175 = vmatpush1.msra.mxu0 0.0
        %1176 = vmatprep.subr.mxu0 0.0
        %1177 = vmatpush1.msra.mxu0 0.0
        %1178 = vmatprep.subr.mxu0 0.0
        %1179 = vmatpush1.msra.mxu0 0.0
        %1180 = vmatprep.subr.mxu0 0.0
        %1181 = vmatpush1.msra.mxu0 0.0
        %1182 = vmatprep.subr.mxu0 0.0
        %1183 = vmatpush1.msra.mxu0 0.0
        %1184 = vmatprep.subr.mxu0 0.0
        %1185 = vmatpush1.msra.mxu0 0.0
        %1186 = vmatprep.subr.mxu0 0.0
        %1187 = vmatpush1.msra.mxu0 0.0
        %1188 = vmatprep.subr.mxu0 0.0
        %1189 = vmatpush1.msra.mxu0 0.0
        %1190 = vmatprep.subr.mxu0 0.0
        %1191 = vmatpush1.msra.mxu0 0.0
        %1192 = vmatprep.subr.mxu0 0.0
        %1193 = vmatpush1.msra.mxu0 0.0
        %1194 = vmatprep.subr.mxu0 0.0
        %1195 = vmatpush1.msra.mxu0 0.0
        %1196 = vmatprep.subr.mxu0 0.0
        %1197 = vmatpush1.msra.mxu0 0.0
        %1198 = vmatprep.subr.mxu0 0.0
        %1199 = vmatpush1.msra.mxu0 0.0
        %1200 = vmatprep.subr.mxu0 0.0
        %1201 = vmatpush1.msra.mxu0 0.0
        %1202 = vmatprep.subr.mxu0 0.0
        %1203 = vmatpush1.msra.mxu0 0.0
        %1204 = vmatprep.subr.mxu0 0.0
        %1205 = vmatpush1.msra.mxu0 0.0
        %1206 = vmatprep.subr.mxu0 0.0
        %1207 = vmatpush1.msra.mxu0 0.0
        %1208 = vmatprep.subr.mxu0 0.0
        %1209 = vmatpush1.msra.mxu0 0.0
        %1210 = vmatprep.subr.mxu0 0.0
        %1211 = vmatpush1.msra.mxu0 0.0
        %1212 = vmatprep.mubr.f32.mxu0 0.0
        %1213 = vmatmul.mubr.f32.gmra.mrb[0].mxu0 %v1146
        %v1214 = vpop.f32.mrb[0].mxu0
        %v1215 = vadd.f32 0.0, %v1214
        %v1216 = vpop.f32.mrb[0].mxu0
        %1217 = vdwg.mxu0
        %1218 = vrot.lane.b32.xlu0 %v769, 40
        %v1219 = vpop.permute.xlu0 %1218
        %v1220 = vsel %vm773, %v1219, 0
        %1222 = vmatprep.subr.mxu0 0.0
        %1223 = vmatpush1.msra.mxu0 %v771
        %1224 = vmatprep.subr.mxu0 0.0
        %1225 = vmatpush1.msra.mxu0 %v772
        %1226 = vmatprep.subr.mxu0 0.0
        %1227 = vmatpush1.msra.mxu0 0.0
        %1228 = vmatprep.subr.mxu0 0.0
        %1229 = vmatpush1.msra.mxu0 0.0
        %1230 = vmatprep.subr.mxu0 0.0
        %1231 = vmatpush1.msra.mxu0 0.0
        %1232 = vmatprep.subr.mxu0 0.0
        %1233 = vmatpush1.msra.mxu0 0.0
        %1234 = vmatprep.subr.mxu0 0.0
        %1235 = vmatpush1.msra.mxu0 0.0
        %1236 = vmatprep.subr.mxu0 0.0
        %1237 = vmatpush1.msra.mxu0 0.0
        %1238 = vmatprep.subr.mxu0 0.0
        %1239 = vmatpush1.msra.mxu0 0.0
        %1240 = vmatprep.subr.mxu0 0.0
        %1241 = vmatpush1.msra.mxu0 0.0
        %1242 = vmatprep.subr.mxu0 0.0
        %1243 = vmatpush1.msra.mxu0 0.0
        %1244 = vmatprep.subr.mxu0 0.0
        %1245 = vmatpush1.msra.mxu0 0.0
        %1246 = vmatprep.subr.mxu0 0.0
        %1247 = vmatpush1.msra.mxu0 0.0
        %1248 = vmatprep.subr.mxu0 0.0
        %1249 = vmatpush1.msra.mxu0 0.0
        %1250 = vmatprep.subr.mxu0 0.0
        %1251 = vmatpush1.msra.mxu0 0.0
        %1252 = vmatprep.subr.mxu0 0.0
        %1253 = vmatpush1.msra.mxu0 0.0
        %1254 = vmatprep.subr.mxu0 0.0
        %1255 = vmatpush1.msra.mxu0 0.0
        %1256 = vmatprep.subr.mxu0 0.0
        %1257 = vmatpush1.msra.mxu0 0.0
        %1258 = vmatprep.subr.mxu0 0.0
        %1259 = vmatpush1.msra.mxu0 0.0
        %1260 = vmatprep.subr.mxu0 0.0
        %1261 = vmatpush1.msra.mxu0 0.0
        %1262 = vmatprep.subr.mxu0 0.0
        %1263 = vmatpush1.msra.mxu0 0.0
        %1264 = vmatprep.subr.mxu0 0.0
        %1265 = vmatpush1.msra.mxu0 0.0
        %1266 = vmatprep.subr.mxu0 0.0
        %1267 = vmatpush1.msra.mxu0 0.0
        %1268 = vmatprep.subr.mxu0 0.0
        %1269 = vmatpush1.msra.mxu0 0.0
        %1270 = vmatprep.subr.mxu0 0.0
        %1271 = vmatpush1.msra.mxu0 0.0
        %1272 = vmatprep.subr.mxu0 0.0
        %1273 = vmatpush1.msra.mxu0 0.0
        %1274 = vmatprep.subr.mxu0 0.0
        %1275 = vmatpush1.msra.mxu0 0.0
        %1276 = vmatprep.subr.mxu0 0.0
        %1277 = vmatpush1.msra.mxu0 0.0
        %1278 = vmatprep.subr.mxu0 0.0
        %1279 = vmatpush1.msra.mxu0 0.0
        %1280 = vmatprep.subr.mxu0 0.0
        %1281 = vmatpush1.msra.mxu0 0.0
        %1282 = vmatprep.subr.mxu0 0.0
        %1283 = vmatpush1.msra.mxu0 0.0
        %1284 = vmatprep.subr.mxu0 0.0
        %1285 = vmatpush1.msra.mxu0 0.0
        %1286 = vmatprep.mubr.f32.mxu0 0.0
        %1287 = vmatmul.mubr.f32.gmra.mrb[0].mxu0 %v1220
        %v1288 = vpop.f32.mrb[0].mxu0
        %v1289 = vadd.f32 0.0, %v1288
        %v1290 = vpop.f32.mrb[0].mxu0
        %1291 = vdwg.mxu0
        %1293 = vrot.lane.b32.xlu0 %v769, 4
        %v1294 = vpop.permute.xlu0 %1293
        %1295 = vrot.lane.b32.xlu0 %v770, 4
        %v1296 = vpop.permute.xlu0 %1295
        %vm1297 = vcmask 31744
        %v1298 = vsel %vm1297, %v1294, %v1296
        %v1299 = vsel %vm773, %v1298, 0
        %1301 = vmatprep.subr.mxu0 0.0
        %1302 = vmatpush1.msra.mxu0 %v771
        %1303 = vmatprep.subr.mxu0 0.0
        %1304 = vmatpush1.msra.mxu0 %v772
        %1305 = vmatprep.subr.mxu0 0.0
        %1306 = vmatpush1.msra.mxu0 0.0
        %1307 = vmatprep.subr.mxu0 0.0
        %1308 = vmatpush1.msra.mxu0 0.0
        %1309 = vmatprep.subr.mxu0 0.0
        %1310 = vmatpush1.msra.mxu0 0.0
        %1311 = vmatprep.subr.mxu0 0.0
        %1312 = vmatpush1.msra.mxu0 0.0
        %1313 = vmatprep.subr.mxu0 0.0
        %1314 = vmatpush1.msra.mxu0 0.0
        %1315 = vmatprep.subr.mxu0 0.0
        %1316 = vmatpush1.msra.mxu0 0.0
        %1317 = vmatprep.subr.mxu0 0.0
        %1318 = vmatpush1.msra.mxu0 0.0
        %1319 = vmatprep.subr.mxu0 0.0
        %1320 = vmatpush1.msra.mxu0 0.0
        %1321 = vmatprep.subr.mxu0 0.0
        %1322 = vmatpush1.msra.mxu0 0.0
        %1323 = vmatprep.subr.mxu0 0.0
        %1324 = vmatpush1.msra.mxu0 0.0
        %1325 = vmatprep.subr.mxu0 0.0
        %1326 = vmatpush1.msra.mxu0 0.0
        %1327 = vmatprep.subr.mxu0 0.0
        %1328 = vmatpush1.msra.mxu0 0.0
        %1329 = vmatprep.subr.mxu0 0.0
        %1330 = vmatpush1.msra.mxu0 0.0
        %1331 = vmatprep.subr.mxu0 0.0
        %1332 = vmatpush1.msra.mxu0 0.0
        %1333 = vmatprep.subr.mxu0 0.0
        %1334 = vmatpush1.msra.mxu0 0.0
        %1335 = vmatprep.subr.mxu0 0.0
        %1336 = vmatpush1.msra.mxu0 0.0
        %1337 = vmatprep.subr.mxu0 0.0
        %1338 = vmatpush1.msra.mxu0 0.0
        %1339 = vmatprep.subr.mxu0 0.0
        %1340 = vmatpush1.msra.mxu0 0.0
        %1341 = vmatprep.subr.mxu0 0.0
        %1342 = vmatpush1.msra.mxu0 0.0
        %1343 = vmatprep.subr.mxu0 0.0
        %1344 = vmatpush1.msra.mxu0 0.0
        %1345 = vmatprep.subr.mxu0 0.0
        %1346 = vmatpush1.msra.mxu0 0.0
        %1347 = vmatprep.subr.mxu0 0.0
        %1348 = vmatpush1.msra.mxu0 0.0
        %1349 = vmatprep.subr.mxu0 0.0
        %1350 = vmatpush1.msra.mxu0 0.0
        %1351 = vmatprep.subr.mxu0 0.0
        %1352 = vmatpush1.msra.mxu0 0.0
        %1353 = vmatprep.subr.mxu0 0.0
        %1354 = vmatpush1.msra.mxu0 0.0
        %1355 = vmatprep.subr.mxu0 0.0
        %1356 = vmatpush1.msra.mxu0 0.0
        %1357 = vmatprep.subr.mxu0 0.0
        %1358 = vmatpush1.msra.mxu0 0.0
        %1359 = vmatprep.subr.mxu0 0.0
        %1360 = vmatpush1.msra.mxu0 0.0
        %1361 = vmatprep.subr.mxu0 0.0
        %1362 = vmatpush1.msra.mxu0 0.0
        %1363 = vmatprep.subr.mxu0 0.0
        %1364 = vmatpush1.msra.mxu0 0.0
        %1365 = vmatprep.mubr.f32.mxu0 0.0
        %1366 = vmatmul.mubr.f32.gmra.mrb[0].mxu0 %v1299
        %v1367 = vpop.f32.mrb[0].mxu0
        %v1368 = vadd.f32 0.0, %v1367
        %v1369 = vpop.f32.mrb[0].mxu0
        %1370 = vdwg.mxu0
        %1372 = vrot.lane.b32.xlu0 %v918, 8
        %v1373 = vpop.permute.xlu0 %1372
        %1376 = vrot.lane.b32.xlu0 %v992, 16
        %v1377 = vpop.permute.xlu0 %1376
        %1380 = vrot.lane.b32.xlu0 %v1066, 24
        %v1381 = vpop.permute.xlu0 %1380
        %1384 = vrot.lane.b32.xlu0 %v1141, 32
        %v1385 = vpop.permute.xlu0 %1384
        %1388 = vrot.lane.b32.xlu0 %v1215, 40
        %v1389 = vpop.permute.xlu0 %1388
        %1392 = vrot.lane.b32.xlu0 %v1289, 48
        %v1393 = vpop.permute.xlu0 %1392
        %1396 = vrot.lane.b32.xlu0 %v1368, 56
        %v1397 = vpop.permute.xlu0 %1396
        %vm1399 = vcmask 64512
        %v1400 = vsel %vm1399, %v844, %v1373
        %v1401 = vsel %vm773, %v1400, %v1377
        %vm1402 = vcmask 195584
        %v1403 = vsel %vm1402, %v1401, %v1381
        %vm1404 = vcmask 261120
        %v1405 = vsel %vm1404, %v1403, %v1385
        %vm1406 = vcmask 326656
        %v1407 = vsel %vm1406, %v1405, %v1389
        %vm1408 = vcmask 392192
        %v1409 = vsel %vm1408, %v1407, %v1393
        %vm1410 = vcmask 457728
        %v1411 = vsel %vm1410, %v1409, %v1397
        %vm1412 = vcmask 523264
        %1413 = vst.msk [vmem:[%s217] sm:$0xff] %vm1412, %v1411
        %s1414 = sand.u32 %s137, 1
        %s1415 = scalar_lea.sflag [#allocation4], %s1414
        %s1416 = sand.u32 %s137, 1
        %s1417 = smul.addr %s1416, 8
        %s1418 = scalar_lea.vmem [#allocation3], %s1417
        // Predicated region
        $region41: #{tpu_custom_call.1} parent=39 // pred_check
          %p1419 = pneg %p147
        $region42: #{tpu_custom_call.1} parent=39 // pred_check_branch
          %1421 = sbr.rel (%p1419) target = $region44
        $region43: #{tpu_custom_call.1} parent=39 // pred_region
          %s1423 = ssub.s32 128, 128
          %1424 = vsyncadd %s1415, %s1423
          %s1425 = smul.addr %s19, 128
          %s1426 = scalar_lea.hbm %s5, %s1425
          %s1428 = sshll.u32 %s1418, 4
          %s1429 = int_to_ptr.vmem [resolvable:$true] %s1428
          %1431 = dma.vmem_to_hbm [thread:$0]  %s1429, 128, %s1426, %s1415
        $region44: #{tpu_custom_call.1} parent=39 // pred_fallthru
          _
      $region40: #{tpu_custom_call.1} parent=5 // pred_fallthru
        _
      %p1432 = scmp.le.s32.totalorder 2, %s14
      // Predicated region
      $region45: #{tpu_custom_call.1} parent=5 // pred_check
        %p1433 = pneg %p1432
      $region46: #{tpu_custom_call.1} parent=5 // pred_check_branch
        %1435 = sbr.rel (%p1433) target = $region48
      $region47: #{tpu_custom_call.1} parent=5 // pred_region
        %s1436 = ssub.s32 %s14, 2
        // Predicated region
        $region49: #{tpu_custom_call.1} parent=47 // pred_check
          %p1437 = pneg %p153
        $region50: #{tpu_custom_call.1} parent=47 // pred_check_branch
          %1439 = sbr.rel (%p1437) target = $region52
        $region51: #{tpu_custom_call.1} parent=47 // pred_region
          %s1440 = sand.u32 %s138, 1
          %s1441 = scalar_lea.sflag [#allocation4], %s1440
          %s1442 = sand.u32 %s138, 1
          %s1443 = smul.addr %s1442, 8
          %s1444 = scalar_lea.vmem [#allocation3], %s1443
          %1445 = dma.done %s1441, 128
        $region52: #{tpu_custom_call.1} parent=47 // pred_fallthru
          _
      $region48: #{tpu_custom_call.1} parent=5 // pred_fallthru
        _
    $region6: #{tpu_custom_call.1} parent=1 // loop_footer
      %s18 = sadd.s32 1, %s14
    $region7: #{tpu_custom_call.1} parent=1 // loop_footer_branch
      %13 = sbr.rel target = $region3
    $region8: #{tpu_custom_call.1} parent=1 // loop_exit
      _
    %1446 = vsyncpa [#allocation4], 1
    %s1447 = scalar_lea.sflag [#allocation4], 1
    %1448 = vsyncpa %s1447, 1

</llo_original>
